<compile_context>
chip_gen: v7x
topology: tpu7x:2x2x1
jax: 0.10.0
libtpu: 0.0.40
codegen_flags: <defaults>
</compile_context>

<pallas_src>
import jax
import jax.numpy as jnp
from jax import lax
from jax.experimental import pallas as pl
from jax.experimental.pallas import tpu as pltpu

EPS = 1e-6
_ATTN_VMEM_BUDGET = 44 * 1024 * 1024   # conservative: fits v7x 64 MiB/TC
_VMEM_LIMIT_CAP = 64 * 1024 * 1024     # smallest physical VMEM across targets


# ---------------------------------------------------------------------------
# Kernel 1: GroupNorm affine + fused QKV projection
# ---------------------------------------------------------------------------
def _qkv_proj_kernel(x_ref, scale_ref, shift_ref, wqkv_ref, bqkv_ref, qkv_ref):
    # x: (TN, Cp) f32, scale/shift: (1, Cp) f32,
    # wqkv: (Cp, 3Cp) bf16, bqkv: (1, 3Cp) f32  ->  qkv: (TN, 3Cp) bf16
    h = x_ref[...] * scale_ref[...] + shift_ref[...]            # fp32 VPU
    acc = jnp.dot(h.astype(jnp.bfloat16), wqkv_ref[...],
                  preferred_element_type=jnp.float32)           # MXU, f32 acc
    qkv_ref[...] = (acc + bqkv_ref[...]).astype(jnp.bfloat16)


# ---------------------------------------------------------------------------
# Kernel 2a: resident-K/V single-pass attention + proj_out + residual
#   (used when K, V and the (TQ, N) score temp fit the VMEM budget)
# ---------------------------------------------------------------------------
def _attn_onepass_kernel(q_ref, k_ref, v_ref, xres_ref, wp_ref, bp_ref, o_ref):
    # q: (TQ, Cp) bf16, k/v: (N, Cp) bf16, xres: (TQ, Cp) f32
    s = lax.dot_general(q_ref[...], k_ref[...],
                        (((1,), (1,)), ((), ())),
                        preferred_element_type=jnp.float32)     # (TQ, N) f32
    m = jnp.max(s, axis=-1, keepdims=True)
    p = jnp.exp(s - m)
    l = jnp.sum(p, axis=-1, keepdims=True)
    pv = jnp.dot(p.astype(jnp.bfloat16), v_ref[...],
                 preferred_element_type=jnp.float32)            # (TQ, Cp) f32
    attn = pv / l                                               # exact norm
    o = jnp.dot(attn.astype(jnp.bfloat16), wp_ref[...],
                preferred_element_type=jnp.float32) + bp_ref[...]
    o_ref[...] = xres_ref[...] + o


# ---------------------------------------------------------------------------
# Kernel 2b: flash attention (online softmax) + proj_out + residual
# ---------------------------------------------------------------------------
def _flash_attn_kernel(q_ref, k_ref, v_ref, xres_ref, wp_ref, bp_ref,
                       o_ref, m_sc, l_sc, acc_sc):
    ki = pl.program_id(2)

    @pl.when(ki == 0)
    def _init():
        m_sc[...] = jnp.full_like(m_sc[...], -jnp.inf)
        l_sc[...] = jnp.zeros_like(l_sc[...])
        acc_sc[...] = jnp.zeros_like(acc_sc[...])

    # logits: contract channel dims directly (no explicit k transpose).
    # 1/sqrt(C) is already folded into q via the fused weight.
    s = lax.dot_general(q_ref[...], k_ref[...],
                        (((1,), (1,)), ((), ())),
                        preferred_element_type=jnp.float32)     # (TQ, TK) f32

    m_prev = m_sc[...]
    m_new = jnp.maximum(m_prev, jnp.max(s, axis=-1, keepdims=True))
    alpha = jnp.exp(m_prev - m_new)
    p = jnp.exp(s - m_new)
    l_sc[...] = alpha * l_sc[...] + jnp.sum(p, axis=-1, keepdims=True)
    acc_sc[...] = alpha * acc_sc[...] + jnp.dot(
        p.astype(jnp.bfloat16), v_ref[...],
        preferred_element_type=jnp.float32)
    m_sc[...] = m_new

    @pl.when(ki == pl.num_programs(2) - 1)
    def _finalize():
        attn = acc_sc[...] / l_sc[...]                          # exact norm
        o = jnp.dot(attn.astype(jnp.bfloat16), wp_ref[...],
                    preferred_element_type=jnp.float32) + bp_ref[...]
        o_ref[...] = xres_ref[...] + o


# ---------------------------------------------------------------------------
# Wrapper helpers
# ---------------------------------------------------------------------------
def _round_up(x, m):
    return (x + m - 1) // m * m


def _pick_tile(n, target, mult=16):
    """Largest tile <= target dividing n; prefer multiples of `mult` (bf16)."""
    target = max(8, min(n, target))
    if n <= target:
        return n
    for t in range(target, mult - 1, -1):
        if n % t == 0 and t % mult == 0:
            return t
    for t in range(target, 7, -1):          # relax to f32-friendly 8-multiples
        if n % t == 0 and t % 8 == 0:
            return t
    # No usable divisor: a full-extent block is always layout-legal, but guard
    # against silently blowing VMEM on huge prime-ish N.
    if n > 4096:
        raise ValueError(f"no tile <= {target} divides N={n}; refusing full-N block")
    return n


def _pad2(w, cp):
    return jnp.pad(w, ((0, cp - w.shape[0]), (0, cp - w.shape[1])))


def _pad1(v, cp):
    return jnp.pad(v, (0, cp - v.shape[0]))


def _vmem_limit(estimate):
    return int(min(max(int(estimate * 1.4), 32 * 1024 * 1024), _VMEM_LIMIT_CAP))


def _proj_vmem_bytes(tn, cp):
    blocks = 2 * (tn * cp * 4 + 2 * cp * 4           # x, scale, shift
                  + cp * 3 * cp * 2 + 3 * cp * 4     # wqkv, bqkv
                  + tn * 3 * cp * 2)                 # qkv out
    temps = tn * cp * 4 + tn * cp * 2 + tn * 3 * cp * 4
    return blocks + temps


def _onepass_vmem_bytes(tq, n, cp):
    blocks = 2 * (tq * cp * 2                        # q
                  + 2 * n * cp * 2                   # resident K, V
                  + tq * cp * 4                      # residual x
                  + cp * cp * 2 + cp * 4             # wp, bp
                  + tq * cp * 4)                     # out
    temps = tq * n * 4 + tq * n * 2 + 2 * tq * cp * 4
    return blocks + temps


def _flash_vmem_bytes(tq, tk, cp):
    blocks = 2 * (tq * cp * 2                        # q
                  + 2 * tk * cp * 2                  # k, v
                  + tq * cp * 4                      # residual x
                  + cp * cp * 2 + cp * 4             # wp, bp
                  + tq * cp * 4)                     # out
    scratch = 2 * tq * 4 + tq * cp * 4
    temps = tq * tk * 4 + tq * tk * 2 + tq * cp * 4
    return blocks + scratch + temps


# ---------------------------------------------------------------------------
# Wrapper
# ---------------------------------------------------------------------------
def spatial_self_attention(x_nchw, params, *, num_groups=32,
                           tq=512, tk=512, tn=512,
                           kv_resident_budget_bytes=_ATTN_VMEM_BUDGET):
    """x_nchw: (B, C, H, W) float32. Returns (B, C, H, W) float32."""
    b, c, h, w = x_nchw.shape
    n = h * w
    assert c % num_groups == 0
    cp = _round_up(c, 128)            # lane-dense channel padding

    x_nchw = x_nchw.astype(jnp.float32)

    # ---- GroupNorm statistics (cheap pure JAX) -> per-(batch, channel) affine.
    cs = c // num_groups
    xg = x_nchw.reshape(b, num_groups, cs * h * w)
    mean = jnp.mean(xg, axis=-1)                                   # (b, G)
    var = jnp.mean(jnp.square(xg - mean[..., None]), axis=-1)      # (b, G)
    inv = lax.rsqrt(var + EPS)                                     # (b, G)
    inv_c = jnp.repeat(inv, cs, axis=1)                            # (b, C)
    mean_c = jnp.repeat(mean, cs, axis=1)                          # (b, C)
    gamma = params["gamma"].reshape(1, c)
    beta = params["beta"].reshape(1, c)
    scale = gamma * inv_c                                          # (b, C)
    shift = beta - mean_c * gamma * inv_c                          # (b, C)

    # ---- layout: NCHW -> (B, N, C), zero-pad channels to Cp.
    # TODO(synk): on v5e this transpose could be fused into kernel 1 (on-chip
    # XLU transpose of (C, TN) blocks) to save one fp32 HBM round-trip.
    x_bnc = jnp.transpose(x_nchw.reshape(b, c, n), (0, 2, 1))      # (b, n, c)
    x_bnc = jnp.pad(x_bnc, ((0, 0), (0, 0), (0, cp - c)))          # (b, n, cp)
    scale = jnp.pad(scale, ((0, 0), (0, cp - c))).reshape(b, 1, cp)
    shift = jnp.pad(shift, ((0, 0), (0, cp - c))).reshape(b, 1, cp)

    # ---- fused QKV weights; attention scale folded into the q columns.
    attn_scale = float(c) ** (-0.5)
    wqkv = jnp.concatenate(
        [_pad2(params["wq"] * attn_scale, cp),
         _pad2(params["wk"], cp),
         _pad2(params["wv"], cp)], axis=1).astype(jnp.bfloat16)    # (cp, 3cp)
    bqkv = jnp.concatenate(
        [_pad1(params["bq"] * attn_scale, cp),
         _pad1(params["bk"], cp),
         _pad1(params["bv"], cp)]).reshape(1, 3 * cp)              # f32
    wp = _pad2(params["wp"], cp).astype(jnp.bfloat16)              # (cp, cp)
    bp = _pad1(params["bp"], cp).reshape(1, cp)                    # f32

    # ---- kernel 1: qkv = (x*scale + shift) @ wqkv + bqkv  (bf16 output).
    tn = _pick_tile(n, tn)
    qkv = pl.pallas_call(
        _qkv_proj_kernel,
        out_shape=jax.ShapeDtypeStruct((b, n, 3 * cp), jnp.bfloat16),
        grid_spec=pltpu.PrefetchScalarGridSpec(
            num_scalar_prefetch=0,
            grid=(b, n // tn),
            in_specs=[
                pl.BlockSpec((None, tn, cp), lambda bi, ti: (bi, ti, 0)),
                pl.BlockSpec((None, 1, cp), lambda bi, ti: (bi, 0, 0)),
                pl.BlockSpec((None, 1, cp), lambda bi, ti: (bi, 0, 0)),
                pl.BlockSpec((cp, 3 * cp), lambda bi, ti: (0, 0)),
                pl.BlockSpec((1, 3 * cp), lambda bi, ti: (0, 0)),
            ],
            out_specs=pl.BlockSpec((None, tn, 3 * cp),
                                   lambda bi, ti: (bi, ti, 0)),
        ),
        compiler_params=pltpu.CompilerParams(
            dimension_semantics=("parallel", "parallel"),
            vmem_limit_bytes=_vmem_limit(_proj_vmem_bytes(tn, cp))),
    )(x_bnc, scale, shift, wqkv, bqkv)

    # ---- q tiling (keep >=2 parallel work units when batch is 1: v7x megacore).
    tq_target = tq
    if b < 2 and n >= 32:
        tq_target = min(tq_target, n // 2)
    tq = _pick_tile(n, tq_target)

    # ---- kernel 2: attention + proj_out + residual.
    onepass_est = _onepass_vmem_bytes(tq, n, cp)
    if onepass_est <= kv_resident_budget_bytes:
        # Resident K/V single pass: K/V read once per batch, no online rescale.
        out = pl.pallas_call(
            _attn_onepass_kernel,
            out_shape=jax.ShapeDtypeStruct((b, n, cp), jnp.float32),
            grid_spec=pltpu.PrefetchScalarGridSpec(
                num_scalar_prefetch=0,
                grid=(b, n // tq),
                in_specs=[
                    pl.BlockSpec((None, tq, cp), lambda bi, qi: (bi, qi, 0)),
                    pl.BlockSpec((None, n, cp), lambda bi, qi: (bi, 0, 1)),
                    pl.BlockSpec((None, n, cp), lambda bi, qi: (bi, 0, 2)),
                    pl.BlockSpec((None, tq, cp), lambda bi, qi: (bi, qi, 0)),
                    pl.BlockSpec((cp, cp), lambda bi, qi: (0, 0)),
                    pl.BlockSpec((1, cp), lambda bi, qi: (0, 0)),
                ],
                out_specs=pl.BlockSpec((None, tq, cp),
                                       lambda bi, qi: (bi, qi, 0)),
            ),
            compiler_params=pltpu.CompilerParams(
                dimension_semantics=("parallel", "parallel"),
                vmem_limit_bytes=_vmem_limit(onepass_est)),
        )(qkv, qkv, qkv, x_bnc, wp, bp)
    else:
        # Flash path: large tiles, shrink only if the VMEM estimate overflows.
        tk = _pick_tile(n, tk)
        for _ in range(8):
            if _flash_vmem_bytes(tq, tk, cp) <= _ATTN_VMEM_BUDGET:
                break
            new_tk = _pick_tile(n, max(128, tk // 2))
            new_tq = _pick_tile(n, max(128, tq // 2))
            if tk > 128 and new_tk < tk:
                tk = new_tk
            elif tq > 128 and new_tq < tq:
                tq = new_tq
            else:
                break
        out = pl.pallas_call(
            _flash_attn_kernel,
            out_shape=jax.ShapeDtypeStruct((b, n, cp), jnp.float32),
            grid_spec=pltpu.PrefetchScalarGridSpec(
                num_scalar_prefetch=0,
                grid=(b, n // tq, n // tk),
                in_specs=[
                    # q / k / v are column-block slices of the fused qkv tensor.
                    pl.BlockSpec((None, tq, cp), lambda bi, qi, ki: (bi, qi, 0)),
                    pl.BlockSpec((None, tk, cp), lambda bi, qi, ki: (bi, ki, 1)),
                    pl.BlockSpec((None, tk, cp), lambda bi, qi, ki: (bi, ki, 2)),
                    # residual rows of x.
                    pl.BlockSpec((None, tq, cp), lambda bi, qi, ki: (bi, qi, 0)),
                    pl.BlockSpec((cp, cp), lambda bi, qi, ki: (0, 0)),
                    pl.BlockSpec((1, cp), lambda bi, qi, ki: (0, 0)),
                ],
                out_specs=pl.BlockSpec((None, tq, cp),
                                       lambda bi, qi, ki: (bi, qi, 0)),
                scratch_shapes=[
                    pltpu.VMEM((tq, 1), jnp.float32),    # running max
                    pltpu.VMEM((tq, 1), jnp.float32),    # running sum
                    pltpu.VMEM((tq, cp), jnp.float32),   # output accumulator
                ],
            ),
            compiler_params=pltpu.CompilerParams(
                dimension_semantics=("parallel", "parallel", "arbitrary"),
                vmem_limit_bytes=_vmem_limit(_flash_vmem_bytes(tq, tk, cp))),
        )(qkv, qkv, qkv, x_bnc, wp, bp)

    # ---- strip channel padding, back to NCHW.
    out = out[..., :c]
    return jnp.transpose(out, (0, 2, 1)).reshape(b, c, h, w)


# ---------------------------------------------------------------------------
# Pure-JAX fp32 reference (mirrors the PyTorch forward)
# ---------------------------------------------------------------------------
def _reference(x_nchw, params, *, num_groups=32):
    b, c, h, w = x_nchw.shape
    n = h * w
    cs = c // num_groups
    xg = x_nchw.reshape(b, num_groups, cs, h, w)
    mean = jnp.mean(xg, axis=(2, 3, 4), keepdims=True)
    var = jnp.mean((xg - mean) ** 2, axis=(2, 3, 4), keepdims=True)
    hn = ((xg - mean) / jnp.sqrt(var + EPS)).reshape(b, c, h, w)
    hn = hn * params["gamma"].reshape(1, c, 1, 1) + params["beta"].reshape(1, c, 1, 1)

    hnc = jnp.transpose(hn.reshape(b, c, n), (0, 2, 1))           # (b, n, c)
    q = hnc @ params["wq"] + params["bq"]
    k = hnc @ params["wk"] + params["bk"]
    v = hnc @ params["wv"] + params["bv"]
    w_ = jnp.einsum("bic,bjc->bij", q, k) * (float(c) ** -0.5)
    w_ = jax.nn.softmax(w_, axis=2)
    o = jnp.einsum("bij,bjc->bic", w_, v)                          # (b, n, c)
    o = o @ params["wp"] + params["bp"]
    o = jnp.transpose(o, (0, 2, 1)).reshape(b, c, h, w)
    return x_nchw + o


def _init_params(key, c):
    ks = jax.random.split(key, 8)
    s = 1.0 / (c ** 0.5)
    return {
        "gamma": jax.random.normal(ks[0], (c,), jnp.float32) * 0.1 + 1.0,
        "beta": jax.random.normal(ks[1], (c,), jnp.float32) * 0.1,
        # weights stored as (C_in, C_out); a PyTorch 1x1 conv weight (O,I,1,1)
        # corresponds to its transpose.
        "wq": jax.random.normal(ks[2], (c, c), jnp.float32) * s,
        "bq": jax.random.normal(ks[3], (c,), jnp.float32) * 0.02,
        "wk": jax.random.normal(ks[4], (c, c), jnp.float32) * s,
        "bk": jax.random.normal(ks[5], (c,), jnp.float32) * 0.02,
        "wv": jax.random.normal(ks[6], (c, c), jnp.float32) * s,
        "bv": jax.random.normal(ks[7], (c,), jnp.float32) * 0.02,
        "wp": jax.random.normal(jax.random.fold_in(key, 100), (c, c), jnp.float32) * s,
        "bp": jax.random.normal(jax.random.fold_in(key, 101), (c,), jnp.float32) * 0.02,
    }


if __name__ == "__main__":
    key = jax.random.PRNGKey(0)
    # C must be a multiple of 32 (GroupNorm); N = 256.
    B, C, H, W = 2, 64, 16, 16
    kx, kp = jax.random.split(key)
    x = jax.random.normal(kx, (B, C, H, W), jnp.float32)
    params = _init_params(kp, C)

    ref = jax.block_until_ready(_reference(x, params))

    # Path 1: resident-K/V single-pass kernel (auto-selected at this shape).
    out1 = jax.block_until_ready(spatial_self_attention(x, params))
    # Path 2: force the flash/online-softmax kernel with multiple K/V steps.
    out2 = jax.block_until_ready(
        spatial_self_attention(x, params, tq=64, tk=64,
                               kv_resident_budget_bytes=0))

    for name, out in (("onepass", out1), ("flash", out2)):
        assert out.shape == x.shape and out.dtype == jnp.float32
        max_err = float(jnp.max(jnp.abs(out - ref)))
        # bf16 MXU operands (fp32 accumulation) vs. an fp32 reference -> loose tol.
        if not jnp.allclose(out, ref, atol=1e-1, rtol=5e-2):
            raise AssertionError(
                f"{name} path mismatch vs reference (max abs err {max_err})")
    print("KERNEL_OK")
</pallas_src>

<mosaic_0001>
module attributes {stable_mosaic.version = 11 : i64} {
  func.func @_qkv_proj_kernel(%arg0: i32, %arg1: i32, %arg2: memref<1x256x128xf32, #tpu.memory_space<vmem>>, %arg3: memref<1x1x128xf32, #tpu.memory_space<vmem>>, %arg4: memref<1x1x128xf32, #tpu.memory_space<vmem>>, %arg5: memref<128x384xbf16, #tpu.memory_space<vmem>>, %arg6: memref<1x384xf32, #tpu.memory_space<vmem>>, %arg7: memref<1x256x384xbf16, #tpu.memory_space<vmem>>) attributes {dimension_semantics = [#tpu.dimension_semantics<parallel>, #tpu.dimension_semantics<parallel>], iteration_bounds = array<i64: 2, 1>, scalar_prefetch = 0 : i64, scratch_operands = 0 : i64, tpu.core_type = #tpu.core_type<tc>, window_params = [{transform_indices = @transform_0, window_bounds = array<i64: 1, 256, 128>}, {transform_indices = @transform_1, window_bounds = array<i64: 1, 1, 128>}, {transform_indices = @transform_2, window_bounds = array<i64: 1, 1, 128>}, {pipeline_mode = #tpu.pipeline_mode<synchronous>, transform_indices = @transform_3, window_bounds = array<i64: 128, 384>}, {pipeline_mode = #tpu.pipeline_mode<synchronous>, transform_indices = @transform_4, window_bounds = array<i64: 1, 384>}, {transform_indices = @transform_5, window_bounds = array<i64: 1, 256, 384>}]} {
    %c0 = arith.constant 0 : index
    %c0_0 = arith.constant 0 : index
    %c0_1 = arith.constant 0 : index
    %0 = vector.load %arg2[%c0, %c0_0, %c0_1] : memref<1x256x128xf32, #tpu.memory_space<vmem>>, vector<1x256x128xf32>
    %1 = vector.shape_cast %0 : vector<1x256x128xf32> to vector<256x128xf32>
    %c0_2 = arith.constant 0 : index
    %c0_3 = arith.constant 0 : index
    %c0_4 = arith.constant 0 : index
    %2 = vector.load %arg3[%c0_2, %c0_3, %c0_4] : memref<1x1x128xf32, #tpu.memory_space<vmem>>, vector<1x1x128xf32>
    %3 = vector.shape_cast %2 : vector<1x1x128xf32> to vector<1x128xf32>
    %4 = vector.broadcast %3 : vector<1x128xf32> to vector<256x128xf32>
    %5 = arith.mulf %1, %4 : vector<256x128xf32>
    %c0_5 = arith.constant 0 : index
    %c0_6 = arith.constant 0 : index
    %c0_7 = arith.constant 0 : index
    %6 = vector.load %arg4[%c0_5, %c0_6, %c0_7] : memref<1x1x128xf32, #tpu.memory_space<vmem>>, vector<1x1x128xf32>
    %7 = vector.shape_cast %6 : vector<1x1x128xf32> to vector<1x128xf32>
    %8 = vector.broadcast %7 : vector<1x128xf32> to vector<256x128xf32>
    %9 = arith.addf %5, %8 : vector<256x128xf32>
    %10 = arith.truncf %9 : vector<256x128xf32> to vector<256x128xbf16>
    %c0_8 = arith.constant 0 : index
    %c0_9 = arith.constant 0 : index
    %11 = vector.load %arg5[%c0_8, %c0_9] : memref<128x384xbf16, #tpu.memory_space<vmem>>, vector<128x384xbf16>
    %cst = arith.constant dense<0.000000e+00> : vector<256x384xf32>
    %12 = tpu.matmul %10, %11, %cst {dimension_numbers = #tpu.dot_dimension_numbers<[1], [0], [0], [1], [0, 0, 1, 1], [], []>} : vector<256x128xbf16>, vector<128x384xbf16>, vector<256x384xf32> -> vector<256x384xf32>
    %c0_10 = arith.constant 0 : index
    %c0_11 = arith.constant 0 : index
    %13 = vector.load %arg6[%c0_10, %c0_11] : memref<1x384xf32, #tpu.memory_space<vmem>>, vector<1x384xf32>
    %14 = vector.broadcast %13 : vector<1x384xf32> to vector<256x384xf32>
    %15 = arith.addf %12, %14 : vector<256x384xf32>
    %16 = arith.truncf %15 : vector<256x384xf32> to vector<256x384xbf16>
    %c0_12 = arith.constant 0 : index
    %c0_13 = arith.constant 0 : index
    %c0_14 = arith.constant 0 : index
    %17 = vector.load %arg7[%c0_12, %c0_13, %c0_14] : memref<1x256x384xbf16, #tpu.memory_space<vmem>>, vector<1x256x384xbf16>
    %18 = vector.shape_cast %17 : vector<1x256x384xbf16> to vector<256x384xbf16>
    %19 = vector.shape_cast %16 : vector<256x384xbf16> to vector<1x256x384xbf16>
    tpu.vector_store %arg7[%c0_12, %c0_13, %c0_14], %19 {strides = array<i32>} : memref<1x256x384xbf16, #tpu.memory_space<vmem>>, vector<1x256x384xbf16>,
    return
  }
  func.func @transform_0(%arg0: i32, %arg1: i32) -> (i32, i32, i32) {
    %c0_i32 = arith.constant 0 : i32
    %c0_i32_0 = arith.constant 0 : i32
    return %arg0, %arg1, %c0_i32 : i32, i32, i32
  }
  func.func @transform_1(%arg0: i32, %arg1: i32) -> (i32, i32, i32) {
    %c0_i32 = arith.constant 0 : i32
    %c0_i32_0 = arith.constant 0 : i32
    %c0_i32_1 = arith.constant 0 : i32
    return %arg0, %c0_i32, %c0_i32_0 : i32, i32, i32
  }
  func.func @transform_2(%arg0: i32, %arg1: i32) -> (i32, i32, i32) {
    %c0_i32 = arith.constant 0 : i32
    %c0_i32_0 = arith.constant 0 : i32
    %c0_i32_1 = arith.constant 0 : i32
    return %arg0, %c0_i32, %c0_i32_0 : i32, i32, i32
  }
  func.func @transform_3(%arg0: i32, %arg1: i32) -> (i32, i32) {
    %c0_i32 = arith.constant 0 : i32
    %c0_i32_0 = arith.constant 0 : i32
    %c0_i32_1 = arith.constant 0 : i32
    return %c0_i32, %c0_i32_0 : i32, i32
  }
  func.func @transform_4(%arg0: i32, %arg1: i32) -> (i32, i32) {
    %c0_i32 = arith.constant 0 : i32
    %c0_i32_0 = arith.constant 0 : i32
    %c0_i32_1 = arith.constant 0 : i32
    return %c0_i32, %c0_i32_0 : i32, i32
  }
  func.func @transform_5(%arg0: i32, %arg1: i32) -> (i32, i32, i32) {
    %c0_i32 = arith.constant 0 : i32
    %c0_i32_0 = arith.constant 0 : i32
    return %arg0, %arg1, %c0_i32 : i32, i32, i32
  }
}

</mosaic_0001>

<llo_original>
// kernel: tpu_custom_call.1
$region0: #{tpu_custom_call.1}
  #allocation0 [shape = 'u32[]', space=smem, size = 0x4, offset = 0x4, fixed_abs, tag = 'smem constant byte address 0x4 - core index']
  #allocation1 [shape = 'u32[144,128]{1,0:T(1,128)}', space=vmem, size = 0x12000, scoped, tag = 'internal scratch']
  %s0 = inlined_call_operand.hbm [shape: f32[2,256,128], index: 0, kind: input, shape index: {}]
  %s1 = inlined_call_operand.vmem [shape: f32[2,1,128], index: 1, kind: input, shape index: {}]
  %s2 = inlined_call_operand.vmem [shape: f32[2,1,128], index: 2, kind: input, shape index: {}]
  %s3 = inlined_call_operand.hbm [shape: bf16[128,384], index: 3, kind: input, shape index: {}]
  %s4 = inlined_call_operand.vmem [shape: f32[1,384], index: 4, kind: input, shape index: {}]
  %s5 = inlined_call_operand.hbm [shape: bf16[2,256,384], index: 5, kind: output, shape index: {}]
  %s6 = sld [smem:[#allocation0]]
  $region61: #{tpu_custom_call.1} parent=0
    _
  %s8 = ssub.s32 1, %s6
  %s9 = scalar_select 0, %s8, %s6
  $region1: #{tpu_custom_call.1} parent=0
    #allocation2 [shape = 'u8[262144]{0}', space=vmem, size = 0x40000, scoped, tag = 'input window, operand 0']
    #allocation3 [shape = 's32[2]{0}', space=sflag, size = 0x8, scoped, tag = 'scoped memory for tpu_custom_call.1']
    #allocation4 [shape = 's32[2]{0}', space=sflag, size = 0x8, scoped, tag = 'scoped memory for tpu_custom_call.1']
    #allocation5 [shape = 'u8[98304]{0}', space=vmem, size = 0x18000, scoped, tag = 'input window, operand 3, single buffered']
    #allocation6 [shape = 's32[1]{0}', space=sflag, size = 0x4, scoped, tag = 'scoped memory for tpu_custom_call.1']
    #allocation7 [shape = 'u8[393216]{0}', space=vmem, size = 0x60000, scoped, tag = 'output window, operand 0']
    %10 = vsyncpa [#allocation3], 0
    %s11 = scalar_lea.sflag [#allocation3], 1
    %12 = vsyncpa %s11, 0
    %13 = vsyncpa [#allocation6], 0
    %14 = vsyncpa [#allocation4], 0
    %s15 = scalar_lea.sflag [#allocation4], 1
    %16 = vsyncpa %s15, 0
    loop: start=0, step=1, limit=4
    $region2: #{tpu_custom_call.1} parent=1 // loop_pre_header
      _
    $region3: #{tpu_custom_call.1} parent=1 // loop_header
      %s18 = sphi 0, %s22
      %p19 = scmp.ge.s32.totalorder %s18, 4
      %s25 = sphi 0, %s37
      %s26 = sphi 0, %s33
      %s27 = sphi 0, %s25
      %s28 = sphi 0, %s26
      %s29 = sphi 0, %s27
      %s30 = sphi 0, %s28
      %s42 = sphi 0, %s44
      %s45 = sphi 0, %s42
      %s46 = sphi 0, %s45
      %s62 = sphi 0, %s46
      %s68 = sphi 0, %s70
      %s71 = sphi 0, %s68
      %s72 = sphi 0, %s71
      %s88 = sphi 0, %s72
      %s94 = sphi 0, %s96
      %s97 = sphi 0, %s94
      %s98 = sphi 0, %s97
      %s114 = sphi 0, %s98
      %s118 = sphi 0, %s118
      %s120 = sphi 0, %s118
      %s121 = sphi 0, %s120
      %s135 = sphi 0, %s121
      %s139 = sphi 0, %s139
      %s141 = sphi 0, %s139
      %s142 = sphi 0, %s141
      %s156 = sphi 0, %s142
      %s164 = sphi 0, %s166
      %s167 = sphi 0, %s164
      %s168 = sphi 0, %s167
      %s184 = sphi 0, %s168
    $region4: #{tpu_custom_call.1} parent=1 // loop_header_branch
      %21 = sbr.rel (%p19) target = $region8
    $region5: #{tpu_custom_call.1} parent=1 // loop_body
      %s23 = ssub.s32 %s18, 1
      %s24 = ssub.s32 %s18, 2
      %s31 = sadd.s32 1, %s26
      %p32 = scmp.ge.s32.totalorder %s31, 1
      %s33 = scalar_select %p32, 0, %s31
      %s34 = sadd.s32 1, %s25
      %s35 = scalar_select %p32, %s34, %s25
      %p36 = scmp.ge.s32.totalorder %s35, 2
      %s37 = scalar_select %p36, 0, %s35
      %s38 = ssub.s32 %s25, %s37
      %s39 = ssub.s32 %s26, %s33
      %s40 = sor.u32 %s38, %s39
      %p41 = scmp.eq.s32.totalorder %s40, 0
      %s43 = sadd.s32 %s42, 1
      %s44 = scalar_select %p41, %s42, %s43
      %p47 = pneg %p41
      %p48 = scmp.eq.s32.totalorder %s18, 1
      %p49 = por %p47, %p48
      %p50 = scmp.ne.s32.totalorder %s42, %s45
      %p51 = scmp.eq.s32.totalorder %s18, 0
      %p52 = por %p50, %p51
      %p53 = scmp.ne.s32.totalorder %s42, %s45
      %p54 = scmp.eq.s32.totalorder %s23, 1
      %p55 = por %p53, %p54
      %p56 = scmp.ne.s32.totalorder %s45, %s46
      %p57 = scmp.eq.s32.totalorder %s23, 0
      %p58 = por %p56, %p57
      %p59 = scmp.ne.s32.totalorder %s45, %s46
      %p60 = scmp.eq.s32.totalorder %s24, 1
      %p61 = por %p59, %p60
      %p63 = scmp.ne.s32.totalorder %s46, %s62
      %p64 = scmp.eq.s32.totalorder %s24, 0
      %p65 = por %p63, %p64
      %s66 = ssub.s32 %s25, %s37
      %p67 = scmp.eq.s32.totalorder %s66, 0
      %s69 = sadd.s32 %s68, 1
      %s70 = scalar_select %p67, %s68, %s69
      %p73 = pneg %p67
      %p74 = scmp.eq.s32.totalorder %s18, 1
      %p75 = por %p73, %p74
      %p76 = scmp.ne.s32.totalorder %s68, %s71
      %p77 = scmp.eq.s32.totalorder %s18, 0
      %p78 = por %p76, %p77
      %p79 = scmp.ne.s32.totalorder %s68, %s71
      %p80 = scmp.eq.s32.totalorder %s23, 1
      %p81 = por %p79, %p80
      %p82 = scmp.ne.s32.totalorder %s71, %s72
      %p83 = scmp.eq.s32.totalorder %s23, 0
      %p84 = por %p82, %p83
      %p85 = scmp.ne.s32.totalorder %s71, %s72
      %p86 = scmp.eq.s32.totalorder %s24, 1
      %p87 = por %p85, %p86
      %p89 = scmp.ne.s32.totalorder %s72, %s88
      %p90 = scmp.eq.s32.totalorder %s24, 0
      %p91 = por %p89, %p90
      %s92 = ssub.s32 %s25, %s37
      %p93 = scmp.eq.s32.totalorder %s92, 0
      %s95 = sadd.s32 %s94, 1
      %s96 = scalar_select %p93, %s94, %s95
      %p99 = pneg %p93
      %p100 = scmp.eq.s32.totalorder %s18, 1
      %p101 = por %p99, %p100
      %p102 = scmp.ne.s32.totalorder %s94, %s97
      %p103 = scmp.eq.s32.totalorder %s18, 0
      %p104 = por %p102, %p103
      %p105 = scmp.ne.s32.totalorder %s94, %s97
      %p106 = scmp.eq.s32.totalorder %s23, 1
      %p107 = por %p105, %p106
      %p108 = scmp.ne.s32.totalorder %s97, %s98
      %p109 = scmp.eq.s32.totalorder %s23, 0
      %p110 = por %p108, %p109
      %p111 = scmp.ne.s32.totalorder %s97, %s98
      %p112 = scmp.eq.s32.totalorder %s24, 1
      %p113 = por %p111, %p112
      %p115 = scmp.ne.s32.totalorder %s98, %s114
      %p116 = scmp.eq.s32.totalorder %s24, 0
      %p117 = por %p115, %p116
      %s119 = sadd.s32 %s118, 1
      %p122 = scmp.eq.s32.totalorder %s18, 1
      %p123 = scmp.ne.s32.totalorder %s118, %s120
      %p124 = scmp.eq.s32.totalorder %s18, 0
      %p125 = por %p123, %p124
      %p126 = scmp.ne.s32.totalorder %s118, %s120
      %p127 = scmp.eq.s32.totalorder %s23, 1
      %p128 = por %p126, %p127
      %p129 = scmp.ne.s32.totalorder %s120, %s121
      %p130 = scmp.eq.s32.totalorder %s23, 0
      %p131 = por %p129, %p130
      %p132 = scmp.ne.s32.totalorder %s120, %s121
      %p133 = scmp.eq.s32.totalorder %s24, 1
      %p134 = por %p132, %p133
      %p136 = scmp.ne.s32.totalorder %s121, %s135
      %p137 = scmp.eq.s32.totalorder %s24, 0
      %p138 = por %p136, %p137
      %s140 = sadd.s32 %s139, 1
      %p143 = scmp.eq.s32.totalorder %s18, 1
      %p144 = scmp.ne.s32.totalorder %s139, %s141
      %p145 = scmp.eq.s32.totalorder %s18, 0
      %p146 = por %p144, %p145
      %p147 = scmp.ne.s32.totalorder %s139, %s141
      %p148 = scmp.eq.s32.totalorder %s23, 1
      %p149 = por %p147, %p148
      %p150 = scmp.ne.s32.totalorder %s141, %s142
      %p151 = scmp.eq.s32.totalorder %s23, 0
      %p152 = por %p150, %p151
      %p153 = scmp.ne.s32.totalorder %s141, %s142
      %p154 = scmp.eq.s32.totalorder %s24, 1
      %p155 = por %p153, %p154
      %p157 = scmp.ne.s32.totalorder %s142, %s156
      %p158 = scmp.eq.s32.totalorder %s24, 0
      %p159 = por %p157, %p158
      %s160 = ssub.s32 %s25, %s37
      %s161 = ssub.s32 %s26, %s33
      %s162 = sor.u32 %s160, %s161
      %p163 = scmp.eq.s32.totalorder %s162, 0
      %s165 = sadd.s32 %s164, 1
      %s166 = scalar_select %p163, %s164, %s165
      %p169 = pneg %p163
      %p170 = scmp.eq.s32.totalorder %s18, 1
      %p171 = por %p169, %p170
      %p172 = scmp.ne.s32.totalorder %s164, %s167
      %p173 = scmp.eq.s32.totalorder %s18, 0
      %p174 = por %p172, %p173
      %p175 = scmp.ne.s32.totalorder %s164, %s167
      %p176 = scmp.eq.s32.totalorder %s23, 1
      %p177 = por %p175, %p176
      %p178 = scmp.ne.s32.totalorder %s167, %s168
      %p179 = scmp.eq.s32.totalorder %s23, 0
      %p180 = por %p178, %p179
      %p181 = scmp.ne.s32.totalorder %s167, %s168
      %p182 = scmp.eq.s32.totalorder %s24, 1
      %p183 = por %p181, %p182
      %p185 = scmp.ne.s32.totalorder %s168, %s184
      %p186 = scmp.eq.s32.totalorder %s24, 0
      %p187 = por %p185, %p186
      %p188 = scmp.le.s32.totalorder 1, %s18
      %p189 = scmp.lt.s32.totalorder %s18, 3
      %p190 = pnand %p188, %p189
      %p191 = pneg %p190
      // Predicated region
      $region9: #{tpu_custom_call.1} parent=5 // pred_check
        _
      $region10: #{tpu_custom_call.1} parent=5 // pred_check_branch
        %193 = sbr.rel (%p190) target = $region12
      $region11: #{tpu_custom_call.1} parent=5 // pred_region
        %s194 = ssub.s32 %s18, 1
        // Predicated region
        $region13: #{tpu_custom_call.1} parent=11 // pred_check
          %p195 = pneg %p131
        $region14: #{tpu_custom_call.1} parent=11 // pred_check_branch
          %197 = sbr.rel (%p195) target = $region16
        $region15: #{tpu_custom_call.1} parent=11 // pred_region
          %s199 = ssub.s32 3072, 3072
          %200 = vsyncadd [#allocation6], %s199
          %s201 = sshll.u32 [#allocation5], 4
          %s202 = int_to_ptr.vmem [resolvable:$true] %s201
          %207 = dma.hbm_to_vmem [thread:$0]  %s3, 3072, %s202, [#allocation6], 192, 192, 12
        $region16: #{tpu_custom_call.1} parent=11 // pred_fallthru
          _
        // Predicated region
        $region17: #{tpu_custom_call.1} parent=11 // pred_check
          %p208 = pneg %p152
        $region18: #{tpu_custom_call.1} parent=11 // pred_check_branch
          %210 = sbr.rel (%p208) target = $region20
        $region19: #{tpu_custom_call.1} parent=11 // pred_region
          _
        $region20: #{tpu_custom_call.1} parent=11 // pred_fallthru
          _
      $region12: #{tpu_custom_call.1} parent=5 // pred_fallthru
        _
      %p211 = scmp.lt.s32.totalorder %s18, 2
      // Predicated region
      $region21: #{tpu_custom_call.1} parent=5 // pred_check
        %p212 = pneg %p211
      $region22: #{tpu_custom_call.1} parent=5 // pred_check_branch
        %214 = sbr.rel (%p212) target = $region24
      $region23: #{tpu_custom_call.1} parent=5 // pred_region
        // Predicated region
        $region25: #{tpu_custom_call.1} parent=23 // pred_check
          %p215 = pneg %p52
        $region26: #{tpu_custom_call.1} parent=23 // pred_check_branch
          %217 = sbr.rel (%p215) target = $region28
        $region27: #{tpu_custom_call.1} parent=23 // pred_region
          %s218 = sand.u32 %s42, 1
          %s219 = scalar_lea.sflag [#allocation3], %s218
          %s220 = sand.u32 %s42, 1
          %s221 = smul.addr %s220, 256
          %s222 = scalar_lea.vmem [#allocation2], %s221
          %s223 = smul.u32 32, %s26
          %s225 = ssub.s32 4096, 4096
          %226 = vsyncadd %s219, %s225
          %s227 = smul.addr %s25, 32
          %s228 = sadd.s32 %s223, %s227
          %s229 = smul.addr %s228, 128
          %s230 = scalar_lea.hbm %s0, %s229
          %s231 = sshll.u32 %s222, 4
          %s232 = int_to_ptr.vmem [resolvable:$true] %s231
          %237 = dma.hbm_to_vmem [thread:$0]  %s230, 4096, %s232, %s219, 128, 128, 8
        $region28: #{tpu_custom_call.1} parent=23 // pred_fallthru
          _
        // Predicated region
        $region29: #{tpu_custom_call.1} parent=23 // pred_check
          %p238 = pneg %p78
        $region30: #{tpu_custom_call.1} parent=23 // pred_check_branch
          %240 = sbr.rel (%p238) target = $region32
        $region31: #{tpu_custom_call.1} parent=23 // pred_region
          %p241 = scmp.lt.s32.totalorder %s25, 1
          %s242 = scalar_select %p241, %s25, 1
          %s243 = scalar_lea.vmem %s1, %s242
        $region32: #{tpu_custom_call.1} parent=23 // pred_fallthru
          _
        // Predicated region
        $region33: #{tpu_custom_call.1} parent=23 // pred_check
          %p244 = pneg %p104
        $region34: #{tpu_custom_call.1} parent=23 // pred_check_branch
          %246 = sbr.rel (%p244) target = $region36
        $region35: #{tpu_custom_call.1} parent=23 // pred_region
          %p247 = scmp.lt.s32.totalorder %s25, 1
          %s248 = scalar_select %p247, %s25, 1
          %s249 = scalar_lea.vmem %s2, %s248
        $region36: #{tpu_custom_call.1} parent=23 // pred_fallthru
          _
      $region24: #{tpu_custom_call.1} parent=5 // pred_fallthru
        _
      %p250 = scmp.le.s32.totalorder 1, %s18
      %p251 = scmp.lt.s32.totalorder %s18, 3
      %p252 = pnand %p250, %p251
      %p253 = pneg %p252
      // Predicated region
      $region37: #{tpu_custom_call.1} parent=5 // pred_check
        _
      $region38: #{tpu_custom_call.1} parent=5 // pred_check_branch
        %255 = sbr.rel (%p252) target = $region40
      $region39: #{tpu_custom_call.1} parent=5 // pred_region
        %s256 = ssub.s32 %s18, 1
        %s257 = sand.u32 %s45, 1
        %s258 = scalar_lea.sflag [#allocation3], %s257
        %s259 = sand.u32 %s45, 1
        %s260 = smul.addr %s259, 256
        %s261 = scalar_lea.vmem [#allocation2], %s260
        // Predicated region
        $region41: #{tpu_custom_call.1} parent=39 // pred_check
          %p262 = pneg %p58
        $region42: #{tpu_custom_call.1} parent=39 // pred_check_branch
          %264 = sbr.rel (%p262) target = $region44
        $region43: #{tpu_custom_call.1} parent=39 // pred_region
          %265 = dma.done %s258, 4096
        $region44: #{tpu_custom_call.1} parent=39 // pred_fallthru
          _
        // Predicated region
        $region45: #{tpu_custom_call.1} parent=39 // pred_check
          %p266 = pneg %p131
        $region46: #{tpu_custom_call.1} parent=39 // pred_check_branch
          %268 = sbr.rel (%p266) target = $region48
        $region47: #{tpu_custom_call.1} parent=39 // pred_region
          %269 = dma.done [#allocation6], 3072
        $region48: #{tpu_custom_call.1} parent=39 // pred_fallthru
          _
        %s270 = sand.u32 %s45, 1
        %s271 = scalar_lea.sflag [#allocation3], %s270
        %s272 = sand.u32 %s45, 1
        %s273 = smul.addr %s272, 256
        %s274 = scalar_lea.vmem [#allocation2], %s273
        %p275 = pneg %p58
        %p276 = pneg %p55
        %p277 = scmp.lt.s32.totalorder %s27, 1
        %s278 = scalar_select %p277, %s27, 1
        %s279 = scalar_lea.vmem %s1, %s278
        %p280 = pneg %p84
        %p281 = pneg %p81
        %p282 = scmp.lt.s32.totalorder %s27, 1
        %s283 = scalar_select %p282, %s27, 1
        %s284 = scalar_lea.vmem %s2, %s283
        %p285 = pneg %p110
        %p286 = pneg %p107
        %p287 = pneg %p131
        %p288 = pneg %p128
        %p289 = pneg %p152
        %p290 = pneg %p149
        %p291 = pneg %p180
        %p292 = pneg %p177
        %s293 = sand.u32 %s167, 1
        %s294 = scalar_lea.sflag [#allocation4], %s293
        %s295 = sand.u32 %s167, 1
        %s296 = smul.addr %s295, 384
        %s297 = scalar_lea.vmem [#allocation7], %s296
        %s298 = smul.u32 32, %s28
        %p299 = scmp.lt.s32.totalorder %s27, 1
        %s300 = scalar_select %p299, %s27, 1
        %s301 = scalar_lea.vmem %s1, %s300
        %p302 = scmp.lt.s32.totalorder %s27, 1
        %s303 = scalar_select %p302, %s27, 1
        %s304 = scalar_lea.vmem %s2, %s303
        %s305 = smul.u32 32, %s28
        %v307 = vld [vmem:[%s261] sm:$0xff]
        %v308 = vld [vmem:[%s261 + $0x8] sm:$0xff]
        %v309 = vld [vmem:[%s261 + $0x10] sm:$0xff]
        %v310 = vld [vmem:[%s261 + $0x18] sm:$0xff]
        %v311 = vld [vmem:[%s261 + $0x20] sm:$0xff]
        %v312 = vld [vmem:[%s261 + $0x28] sm:$0xff]
        %v313 = vld [vmem:[%s261 + $0x30] sm:$0xff]
        %v314 = vld [vmem:[%s261 + $0x38] sm:$0xff]
        %v315 = vld [vmem:[%s261 + $0x40] sm:$0xff]
        %v316 = vld [vmem:[%s261 + $0x48] sm:$0xff]
        %v317 = vld [vmem:[%s261 + $0x50] sm:$0xff]
        %v318 = vld [vmem:[%s261 + $0x58] sm:$0xff]
        %v319 = vld [vmem:[%s261 + $0x60] sm:$0xff]
        %v320 = vld [vmem:[%s261 + $0x68] sm:$0xff]
        %v321 = vld [vmem:[%s261 + $0x70] sm:$0xff]
        %v322 = vld [vmem:[%s261 + $0x78] sm:$0xff]
        %v323 = vld [vmem:[%s261 + $0x80] sm:$0xff]
        %v324 = vld [vmem:[%s261 + $0x88] sm:$0xff]
        %v325 = vld [vmem:[%s261 + $0x90] sm:$0xff]
        %v326 = vld [vmem:[%s261 + $0x98] sm:$0xff]
        %v327 = vld [vmem:[%s261 + $0xa0] sm:$0xff]
        %v328 = vld [vmem:[%s261 + $0xa8] sm:$0xff]
        %v329 = vld [vmem:[%s261 + $0xb0] sm:$0xff]
        %v330 = vld [vmem:[%s261 + $0xb8] sm:$0xff]
        %v331 = vld [vmem:[%s261 + $0xc0] sm:$0xff]
        %v332 = vld [vmem:[%s261 + $0xc8] sm:$0xff]
        %v333 = vld [vmem:[%s261 + $0xd0] sm:$0xff]
        %v334 = vld [vmem:[%s261 + $0xd8] sm:$0xff]
        %v335 = vld [vmem:[%s261 + $0xe0] sm:$0xff]
        %v336 = vld [vmem:[%s261 + $0xe8] sm:$0xff]
        %v337 = vld [vmem:[%s261 + $0xf0] sm:$0xff]
        %v338 = vld [vmem:[%s261 + $0xf8] sm:$0xff]
        %v339 = vld [vmem:[%s301] sm:$0x1]
        %v341 = vlaneseq
        %v342 = vshrl.u32 %v341, 7
        %v343 = vsub.s32 0, %v342
        %v344 = vrot.slane %v339, %v343
        %v346 = vmul.f32 %v307, %v344
        %v347 = vmul.f32 %v308, %v344
        %v348 = vmul.f32 %v309, %v344
        %v349 = vmul.f32 %v310, %v344
        %v350 = vmul.f32 %v311, %v344
        %v351 = vmul.f32 %v312, %v344
        %v352 = vmul.f32 %v313, %v344
        %v353 = vmul.f32 %v314, %v344
        %v354 = vmul.f32 %v315, %v344
        %v355 = vmul.f32 %v316, %v344
        %v356 = vmul.f32 %v317, %v344
        %v357 = vmul.f32 %v318, %v344
        %v358 = vmul.f32 %v319, %v344
        %v359 = vmul.f32 %v320, %v344
        %v360 = vmul.f32 %v321, %v344
        %v361 = vmul.f32 %v322, %v344
        %v362 = vmul.f32 %v323, %v344
        %v363 = vmul.f32 %v324, %v344
        %v364 = vmul.f32 %v325, %v344
        %v365 = vmul.f32 %v326, %v344
        %v366 = vmul.f32 %v327, %v344
        %v367 = vmul.f32 %v328, %v344
        %v368 = vmul.f32 %v329, %v344
        %v369 = vmul.f32 %v330, %v344
        %v370 = vmul.f32 %v331, %v344
        %v371 = vmul.f32 %v332, %v344
        %v372 = vmul.f32 %v333, %v344
        %v373 = vmul.f32 %v334, %v344
        %v374 = vmul.f32 %v335, %v344
        %v375 = vmul.f32 %v336, %v344
        %v376 = vmul.f32 %v337, %v344
        %v377 = vmul.f32 %v338, %v344
        %v378 = vld [vmem:[%s304] sm:$0x1]
        %v380 = vlaneseq
        %v381 = vshrl.u32 %v380, 7
        %v382 = vsub.s32 0, %v381
        %v383 = vrot.slane %v378, %v382
        %v385 = vadd.f32 %v346, %v383
        %v386 = vadd.f32 %v347, %v383
        %v387 = vadd.f32 %v348, %v383
        %v388 = vadd.f32 %v349, %v383
        %v389 = vadd.f32 %v350, %v383
        %v390 = vadd.f32 %v351, %v383
        %v391 = vadd.f32 %v352, %v383
        %v392 = vadd.f32 %v353, %v383
        %v393 = vadd.f32 %v354, %v383
        %v394 = vadd.f32 %v355, %v383
        %v395 = vadd.f32 %v356, %v383
        %v396 = vadd.f32 %v357, %v383
        %v397 = vadd.f32 %v358, %v383
        %v398 = vadd.f32 %v359, %v383
        %v399 = vadd.f32 %v360, %v383
        %v400 = vadd.f32 %v361, %v383
        %v401 = vadd.f32 %v362, %v383
        %v402 = vadd.f32 %v363, %v383
        %v403 = vadd.f32 %v364, %v383
        %v404 = vadd.f32 %v365, %v383
        %v405 = vadd.f32 %v366, %v383
        %v406 = vadd.f32 %v367, %v383
        %v407 = vadd.f32 %v368, %v383
        %v408 = vadd.f32 %v369, %v383
        %v409 = vadd.f32 %v370, %v383
        %v410 = vadd.f32 %v371, %v383
        %v411 = vadd.f32 %v372, %v383
        %v412 = vadd.f32 %v373, %v383
        %v413 = vadd.f32 %v374, %v383
        %v414 = vadd.f32 %v375, %v383
        %v415 = vadd.f32 %v376, %v383
        %v416 = vadd.f32 %v377, %v383
        %v417 = vpack.c.bf16 %v386, %v385
        %v418 = vpack.c.bf16 %v388, %v387
        %v419 = vpack.c.bf16 %v390, %v389
        %v420 = vpack.c.bf16 %v392, %v391
        %v421 = vpack.c.bf16 %v394, %v393
        %v422 = vpack.c.bf16 %v396, %v395
        %v423 = vpack.c.bf16 %v398, %v397
        %v424 = vpack.c.bf16 %v400, %v399
        %v425 = vpack.c.bf16 %v402, %v401
        %v426 = vpack.c.bf16 %v404, %v403
        %v427 = vpack.c.bf16 %v406, %v405
        %v428 = vpack.c.bf16 %v408, %v407
        %v429 = vpack.c.bf16 %v410, %v409
        %v430 = vpack.c.bf16 %v412, %v411
        %v431 = vpack.c.bf16 %v414, %v413
        %v432 = vpack.c.bf16 %v416, %v415
        %v433 = vld [vmem:[#allocation5] sm:$0xff]
        %v434 = vld [vmem:[#allocation5 + $0x8] sm:$0xf]
        %v435 = vld [vmem:[#allocation5 + $0xc] sm:$0xff]
        %v436 = vld [vmem:[#allocation5 + $0x14] sm:$0xf]
        %v437 = vld [vmem:[#allocation5 + $0x18] sm:$0xff]
        %v438 = vld [vmem:[#allocation5 + $0x20] sm:$0xf]
        %v439 = vld [vmem:[#allocation5 + $0x24] sm:$0xff]
        %v440 = vld [vmem:[#allocation5 + $0x2c] sm:$0xf]
        %v441 = vld [vmem:[#allocation5 + $0x30] sm:$0xff]
        %v442 = vld [vmem:[#allocation5 + $0x38] sm:$0xf]
        %v443 = vld [vmem:[#allocation5 + $0x3c] sm:$0xff]
        %v444 = vld [vmem:[#allocation5 + $0x44] sm:$0xf]
        %v445 = vld [vmem:[#allocation5 + $0x48] sm:$0xff]
        %v446 = vld [vmem:[#allocation5 + $0x50] sm:$0xf]
        %v447 = vld [vmem:[#allocation5 + $0x54] sm:$0xff]
        %v448 = vld [vmem:[#allocation5 + $0x5c] sm:$0xf]
        %v449 = vld [vmem:[#allocation5 + $0x60] sm:$0xff]
        %v450 = vld [vmem:[#allocation5 + $0x68] sm:$0xf]
        %v451 = vld [vmem:[#allocation5 + $0x6c] sm:$0xff]
        %v452 = vld [vmem:[#allocation5 + $0x74] sm:$0xf]
        %v453 = vld [vmem:[#allocation5 + $0x78] sm:$0xff]
        %v454 = vld [vmem:[#allocation5 + $0x80] sm:$0xf]
        %v455 = vld [vmem:[#allocation5 + $0x84] sm:$0xff]
        %v456 = vld [vmem:[#allocation5 + $0x8c] sm:$0xf]
        %v457 = vld [vmem:[#allocation5 + $0x90] sm:$0xff]
        %v458 = vld [vmem:[#allocation5 + $0x98] sm:$0xf]
        %v459 = vld [vmem:[#allocation5 + $0x9c] sm:$0xff]
        %v460 = vld [vmem:[#allocation5 + $0xa4] sm:$0xf]
        %v461 = vld [vmem:[#allocation5 + $0xa8] sm:$0xff]
        %v462 = vld [vmem:[#allocation5 + $0xb0] sm:$0xf]
        %v463 = vld [vmem:[#allocation5 + $0xb4] sm:$0xff]
        %v464 = vld [vmem:[#allocation5 + $0xbc] sm:$0xf]
        %v465 = vld [vmem:[%s4] sm:$0x7]
        %v467 = vlaneseq
        %v468 = vshrl.u32 %v467, 7
        %v469 = vsub.s32 0, %v468
        %v470 = vrot.slane %v465, %v469
        %v471 = vlaneseq
        %v472 = vshrl.u32 %v471, 7
        %v473 = vsub.s32 1, %v472
        %v474 = vrot.slane %v465, %v473
        %v475 = vlaneseq
        %v476 = vshrl.u32 %v475, 7
        %v477 = vsub.s32 2, %v476
        %v478 = vrot.slane %v465, %v477
        %v514 = vunpack.c.l.b16 %v433
        %v515 = vunpack.c.h.b16 %v433
        %v516 = vunpack.c.l.b16 %v434
        %v517 = vunpack.c.l.b16 %v435
        %v518 = vunpack.c.h.b16 %v435
        %v519 = vunpack.c.l.b16 %v436
        %v520 = vunpack.c.l.b16 %v437
        %v521 = vunpack.c.h.b16 %v437
        %v522 = vunpack.c.l.b16 %v438
        %v523 = vunpack.c.l.b16 %v439
        %v524 = vunpack.c.h.b16 %v439
        %v525 = vunpack.c.l.b16 %v440
        %v526 = vunpack.c.l.b16 %v441
        %v527 = vunpack.c.h.b16 %v441
        %v528 = vunpack.c.l.b16 %v442
        %v529 = vunpack.c.l.b16 %v443
        %v530 = vunpack.c.h.b16 %v443
        %v531 = vunpack.c.l.b16 %v444
        %v532 = vunpack.c.l.b16 %v445
        %v533 = vunpack.c.h.b16 %v445
        %v534 = vunpack.c.l.b16 %v446
        %v535 = vunpack.c.l.b16 %v447
        %v536 = vunpack.c.h.b16 %v447
        %v537 = vunpack.c.l.b16 %v448
        %v538 = vunpack.c.l.b16 %v449
        %v539 = vunpack.c.h.b16 %v449
        %v540 = vunpack.c.l.b16 %v450
        %v541 = vunpack.c.l.b16 %v451
        %v542 = vunpack.c.h.b16 %v451
        %v543 = vunpack.c.l.b16 %v452
        %v544 = vunpack.c.l.b16 %v453
        %v545 = vunpack.c.h.b16 %v453
        %v546 = vunpack.c.l.b16 %v454
        %v547 = vunpack.c.l.b16 %v455
        %v548 = vunpack.c.h.b16 %v455
        %v549 = vunpack.c.l.b16 %v456
        %v550 = vunpack.c.l.b16 %v457
        %v551 = vunpack.c.h.b16 %v457
        %v552 = vunpack.c.l.b16 %v458
        %v553 = vunpack.c.l.b16 %v459
        %v554 = vunpack.c.h.b16 %v459
        %v555 = vunpack.c.l.b16 %v460
        %v556 = vunpack.c.l.b16 %v461
        %v557 = vunpack.c.h.b16 %v461
        %v558 = vunpack.c.l.b16 %v462
        %v559 = vunpack.c.l.b16 %v463
        %v560 = vunpack.c.h.b16 %v463
        %v561 = vunpack.c.l.b16 %v464
        %v562 = vpack.c.b16 %v517, %v514
        %v563 = vpack.c.b16 %v518, %v515
        %v564 = vpack.c.b16 %v519, %v516
        %v565 = vpack.c.b16 %v523, %v520
        %v566 = vpack.c.b16 %v524, %v521
        %v567 = vpack.c.b16 %v525, %v522
        %v568 = vpack.c.b16 %v529, %v526
        %v569 = vpack.c.b16 %v530, %v527
        %v570 = vpack.c.b16 %v531, %v528
        %v571 = vpack.c.b16 %v535, %v532
        %v572 = vpack.c.b16 %v536, %v533
        %v573 = vpack.c.b16 %v537, %v534
        %v574 = vpack.c.b16 %v541, %v538
        %v575 = vpack.c.b16 %v542, %v539
        %v576 = vpack.c.b16 %v543, %v540
        %v577 = vpack.c.b16 %v547, %v544
        %v578 = vpack.c.b16 %v548, %v545
        %v579 = vpack.c.b16 %v549, %v546
        %v580 = vpack.c.b16 %v553, %v550
        %v581 = vpack.c.b16 %v554, %v551
        %v582 = vpack.c.b16 %v555, %v552
        %v583 = vpack.c.b16 %v559, %v556
        %v584 = vpack.c.b16 %v560, %v557
        %v585 = vpack.c.b16 %v561, %v558
        %610 = vmatprep.subr.bf16.mxu0 %v563
        %611 = vmatpush1.bf16.msra.mxu0 %v562
        %612 = vmatprep.subr.bf16.mxu0 %v566
        %613 = vmatpush1.bf16.msra.mxu0 %v565
        %614 = vmatprep.subr.bf16.mxu0 %v569
        %615 = vmatpush1.bf16.msra.mxu0 %v568
        %616 = vmatprep.subr.bf16.mxu0 %v572
        %617 = vmatpush1.bf16.msra.mxu0 %v571
        %618 = vmatprep.subr.bf16.mxu0 %v575
        %619 = vmatpush1.bf16.msra.mxu0 %v574
        %620 = vmatprep.subr.bf16.mxu0 %v578
        %621 = vmatpush1.bf16.msra.mxu0 %v577
        %622 = vmatprep.subr.bf16.mxu0 %v581
        %623 = vmatpush1.bf16.msra.mxu0 %v580
        %624 = vmatprep.subr.bf16.mxu0 %v584
        %625 = vmatpush1.bf16.msra.mxu0 %v583
        %626 = vmatprep.subr.bf16.mxu0 0
        %627 = vmatpush1.bf16.msra.mxu0 0
        %628 = vmatprep.subr.bf16.mxu0 0
        %629 = vmatpush1.bf16.msra.mxu0 0
        %630 = vmatprep.subr.bf16.mxu0 0
        %631 = vmatpush1.bf16.msra.mxu0 0
        %632 = vmatprep.subr.bf16.mxu0 0
        %633 = vmatpush1.bf16.msra.mxu0 0
        %634 = vmatprep.subr.bf16.mxu0 0
        %635 = vmatpush1.bf16.msra.mxu0 0
        %636 = vmatprep.subr.bf16.mxu0 0
        %637 = vmatpush1.bf16.msra.mxu0 0
        %638 = vmatprep.subr.bf16.mxu0 0
        %639 = vmatpush1.bf16.msra.mxu0 0
        %640 = vmatprep.subr.bf16.mxu0 0
        %641 = vmatpush1.bf16.msra.mxu0 0
        %642 = vmatprep.mubr.bf16.mxu0 0
        %643 = vmatmul.mubr.bf16.gmra.mrb[0].mxu0 %v417
        %v644 = vpop.f32.mrb[0].mxu0
        %v645 = vadd.f32 %v470, %v644
        %v646 = vpop.f32.mrb[0].mxu0
        %v647 = vadd.f32 %v474, %v646
        %v648 = vpop.f32.mrb[0].mxu0
        %v649 = vadd.f32 %v470, %v648
        %v650 = vpop.f32.mrb[0].mxu0
        %v651 = vadd.f32 %v474, %v650
        %652 = vmatprep.mubr.bf16.mxu0 0
        %653 = vmatmul.mubr.bf16.gmra.mrb[0].mxu0 %v418
        %v654 = vpop.f32.mrb[0].mxu0
        %v655 = vadd.f32 %v470, %v654
        %v656 = vpop.f32.mrb[0].mxu0
        %v657 = vadd.f32 %v474, %v656
        %v658 = vpop.f32.mrb[0].mxu0
        %v659 = vadd.f32 %v470, %v658
        %v660 = vpop.f32.mrb[0].mxu0
        %v661 = vadd.f32 %v474, %v660
        %662 = vmatprep.mubr.bf16.mxu0 0
        %663 = vmatmul.mubr.bf16.gmra.mrb[0].mxu0 %v419
        %v664 = vpop.f32.mrb[0].mxu0
        %v665 = vadd.f32 %v470, %v664
        %v666 = vpop.f32.mrb[0].mxu0
        %v667 = vadd.f32 %v474, %v666
        %v668 = vpop.f32.mrb[0].mxu0
        %v669 = vadd.f32 %v470, %v668
        %v670 = vpop.f32.mrb[0].mxu0
        %v671 = vadd.f32 %v474, %v670
        %672 = vmatprep.mubr.bf16.mxu0 0
        %673 = vmatmul.mubr.bf16.gmra.mrb[0].mxu0 %v420
        %v674 = vpop.f32.mrb[0].mxu0
        %v675 = vadd.f32 %v470, %v674
        %v676 = vpop.f32.mrb[0].mxu0
        %v677 = vadd.f32 %v474, %v676
        %v678 = vpop.f32.mrb[0].mxu0
        %v679 = vadd.f32 %v470, %v678
        %v680 = vpop.f32.mrb[0].mxu0
        %v681 = vadd.f32 %v474, %v680
        %682 = vmatprep.mubr.bf16.mxu0 0
        %683 = vmatmul.mubr.bf16.gmra.mrb[0].mxu0 %v421
        %v684 = vpop.f32.mrb[0].mxu0
        %v685 = vadd.f32 %v470, %v684
        %v686 = vpop.f32.mrb[0].mxu0
        %v687 = vadd.f32 %v474, %v686
        %v688 = vpop.f32.mrb[0].mxu0
        %v689 = vadd.f32 %v470, %v688
        %v690 = vpop.f32.mrb[0].mxu0
        %v691 = vadd.f32 %v474, %v690
        %692 = vmatprep.mubr.bf16.mxu0 0
        %693 = vmatmul.mubr.bf16.gmra.mrb[0].mxu0 %v422
        %v694 = vpop.f32.mrb[0].mxu0
        %v695 = vadd.f32 %v470, %v694
        %v696 = vpop.f32.mrb[0].mxu0
        %v697 = vadd.f32 %v474, %v696
        %v698 = vpop.f32.mrb[0].mxu0
        %v699 = vadd.f32 %v470, %v698
        %v700 = vpop.f32.mrb[0].mxu0
        %v701 = vadd.f32 %v474, %v700
        %702 = vmatprep.mubr.bf16.mxu0 0
        %703 = vmatmul.mubr.bf16.gmra.mrb[0].mxu0 %v423
        %v704 = vpop.f32.mrb[0].mxu0
        %v705 = vadd.f32 %v470, %v704
        %v706 = vpop.f32.mrb[0].mxu0
        %v707 = vadd.f32 %v474, %v706
        %v708 = vpop.f32.mrb[0].mxu0
        %v709 = vadd.f32 %v470, %v708
        %v710 = vpop.f32.mrb[0].mxu0
        %v711 = vadd.f32 %v474, %v710
        %712 = vmatprep.mubr.bf16.mxu0 0
        %713 = vmatmul.mubr.bf16.gmra.mrb[0].mxu0 %v424
        %v714 = vpop.f32.mrb[0].mxu0
        %v715 = vadd.f32 %v470, %v714
        %v716 = vpop.f32.mrb[0].mxu0
        %v717 = vadd.f32 %v474, %v716
        %v718 = vpop.f32.mrb[0].mxu0
        %v719 = vadd.f32 %v470, %v718
        %v720 = vpop.f32.mrb[0].mxu0
        %v721 = vadd.f32 %v474, %v720
        %722 = vmatprep.mubr.bf16.mxu0 0
        %723 = vmatmul.mubr.bf16.gmra.mrb[0].mxu0 %v425
        %v724 = vpop.f32.mrb[0].mxu0
        %v725 = vadd.f32 %v470, %v724
        %v726 = vpop.f32.mrb[0].mxu0
        %v727 = vadd.f32 %v474, %v726
        %v728 = vpop.f32.mrb[0].mxu0
        %v729 = vadd.f32 %v470, %v728
        %v730 = vpop.f32.mrb[0].mxu0
        %v731 = vadd.f32 %v474, %v730
        %732 = vmatprep.mubr.bf16.mxu0 0
        %733 = vmatmul.mubr.bf16.gmra.mrb[0].mxu0 %v426
        %v734 = vpop.f32.mrb[0].mxu0
        %v735 = vadd.f32 %v470, %v734
        %v736 = vpop.f32.mrb[0].mxu0
        %v737 = vadd.f32 %v474, %v736
        %v738 = vpop.f32.mrb[0].mxu0
        %v739 = vadd.f32 %v470, %v738
        %v740 = vpop.f32.mrb[0].mxu0
        %v741 = vadd.f32 %v474, %v740
        %742 = vmatprep.mubr.bf16.mxu0 0
        %743 = vmatmul.mubr.bf16.gmra.mrb[0].mxu0 %v427
        %v744 = vpop.f32.mrb[0].mxu0
        %v745 = vadd.f32 %v470, %v744
        %v746 = vpop.f32.mrb[0].mxu0
        %v747 = vadd.f32 %v474, %v746
        %v748 = vpop.f32.mrb[0].mxu0
        %v749 = vadd.f32 %v470, %v748
        %v750 = vpop.f32.mrb[0].mxu0
        %v751 = vadd.f32 %v474, %v750
        %752 = vmatprep.mubr.bf16.mxu0 0
        %753 = vmatmul.mubr.bf16.gmra.mrb[0].mxu0 %v428
        %v754 = vpop.f32.mrb[0].mxu0
        %v755 = vadd.f32 %v470, %v754
        %v756 = vpop.f32.mrb[0].mxu0
        %v757 = vadd.f32 %v474, %v756
        %v758 = vpop.f32.mrb[0].mxu0
        %v759 = vadd.f32 %v470, %v758
        %v760 = vpop.f32.mrb[0].mxu0
        %v761 = vadd.f32 %v474, %v760
        %762 = vmatprep.mubr.bf16.mxu0 0
        %763 = vmatmul.mubr.bf16.gmra.mrb[0].mxu0 %v429
        %v764 = vpop.f32.mrb[0].mxu0
        %v765 = vadd.f32 %v470, %v764
        %v766 = vpop.f32.mrb[0].mxu0
        %v767 = vadd.f32 %v474, %v766
        %v768 = vpop.f32.mrb[0].mxu0
        %v769 = vadd.f32 %v470, %v768
        %v770 = vpop.f32.mrb[0].mxu0
        %v771 = vadd.f32 %v474, %v770
        %772 = vmatprep.mubr.bf16.mxu0 0
        %773 = vmatmul.mubr.bf16.gmra.mrb[0].mxu0 %v430
        %v774 = vpop.f32.mrb[0].mxu0
        %v775 = vadd.f32 %v470, %v774
        %v776 = vpop.f32.mrb[0].mxu0
        %v777 = vadd.f32 %v474, %v776
        %v778 = vpop.f32.mrb[0].mxu0
        %v779 = vadd.f32 %v470, %v778
        %v780 = vpop.f32.mrb[0].mxu0
        %v781 = vadd.f32 %v474, %v780
        %782 = vmatprep.mubr.bf16.mxu0 0
        %783 = vmatmul.mubr.bf16.gmra.mrb[0].mxu0 %v431
        %v784 = vpop.f32.mrb[0].mxu0
        %v785 = vadd.f32 %v470, %v784
        %v786 = vpop.f32.mrb[0].mxu0
        %v787 = vadd.f32 %v474, %v786
        %v788 = vpop.f32.mrb[0].mxu0
        %v789 = vadd.f32 %v470, %v788
        %v790 = vpop.f32.mrb[0].mxu0
        %v791 = vadd.f32 %v474, %v790
        %792 = vmatprep.mubr.bf16.mxu0 0
        %793 = vmatmul.mubr.bf16.gmra.mrb[0].mxu0 %v432
        %v794 = vpop.f32.mrb[0].mxu0
        %v795 = vadd.f32 %v470, %v794
        %v796 = vpop.f32.mrb[0].mxu0
        %v797 = vadd.f32 %v474, %v796
        %v798 = vpop.f32.mrb[0].mxu0
        %v799 = vadd.f32 %v470, %v798
        %v800 = vpop.f32.mrb[0].mxu0
        %v801 = vadd.f32 %v474, %v800
        %802 = vdwg.mxu0
        %803 = vmatprep.subr.bf16.mxu0 0
        %804 = vmatpush1.bf16.msra.mxu0 %v564
        %805 = vmatprep.subr.bf16.mxu0 0
        %806 = vmatpush1.bf16.msra.mxu0 %v567
        %807 = vmatprep.subr.bf16.mxu0 0
        %808 = vmatpush1.bf16.msra.mxu0 %v570
        %809 = vmatprep.subr.bf16.mxu0 0
        %810 = vmatpush1.bf16.msra.mxu0 %v573
        %811 = vmatprep.subr.bf16.mxu0 0
        %812 = vmatpush1.bf16.msra.mxu0 %v576
        %813 = vmatprep.subr.bf16.mxu0 0
        %814 = vmatpush1.bf16.msra.mxu0 %v579
        %815 = vmatprep.subr.bf16.mxu0 0
        %816 = vmatpush1.bf16.msra.mxu0 %v582
        %817 = vmatprep.subr.bf16.mxu0 0
        %818 = vmatpush1.bf16.msra.mxu0 %v585
        %819 = vmatprep.subr.bf16.mxu0 0
        %820 = vmatpush1.bf16.msra.mxu0 0
        %821 = vmatprep.subr.bf16.mxu0 0
        %822 = vmatpush1.bf16.msra.mxu0 0
        %823 = vmatprep.subr.bf16.mxu0 0
        %824 = vmatpush1.bf16.msra.mxu0 0
        %825 = vmatprep.subr.bf16.mxu0 0
        %826 = vmatpush1.bf16.msra.mxu0 0
        %827 = vmatprep.subr.bf16.mxu0 0
        %828 = vmatpush1.bf16.msra.mxu0 0
        %829 = vmatprep.subr.bf16.mxu0 0
        %830 = vmatpush1.bf16.msra.mxu0 0
        %831 = vmatprep.subr.bf16.mxu0 0
        %832 = vmatpush1.bf16.msra.mxu0 0
        %833 = vmatprep.subr.bf16.mxu0 0
        %834 = vmatpush1.bf16.msra.mxu0 0
        %835 = vmatprep.mubr.bf16.mxu0 0
        %836 = vmatmul.mubr.bf16.gmra.mrb[0].mxu0 %v417
        %v837 = vpop.f32.mrb[0].mxu0
        %v838 = vadd.f32 %v478, %v837
        %v839 = vpop.f32.mrb[0].mxu0
        %v840 = vpop.f32.mrb[0].mxu0
        %v841 = vadd.f32 %v478, %v840
        %v842 = vpop.f32.mrb[0].mxu0
        %843 = vmatprep.mubr.bf16.mxu0 0
        %844 = vmatmul.mubr.bf16.gmra.mrb[0].mxu0 %v418
        %v845 = vpop.f32.mrb[0].mxu0
        %v846 = vadd.f32 %v478, %v845
        %v847 = vpop.f32.mrb[0].mxu0
        %v848 = vpop.f32.mrb[0].mxu0
        %v849 = vadd.f32 %v478, %v848
        %v850 = vpop.f32.mrb[0].mxu0
        %851 = vmatprep.mubr.bf16.mxu0 0
        %852 = vmatmul.mubr.bf16.gmra.mrb[0].mxu0 %v419
        %v853 = vpop.f32.mrb[0].mxu0
        %v854 = vadd.f32 %v478, %v853
        %v855 = vpop.f32.mrb[0].mxu0
        %v856 = vpop.f32.mrb[0].mxu0
        %v857 = vadd.f32 %v478, %v856
        %v858 = vpop.f32.mrb[0].mxu0
        %859 = vmatprep.mubr.bf16.mxu0 0
        %860 = vmatmul.mubr.bf16.gmra.mrb[0].mxu0 %v420
        %v861 = vpop.f32.mrb[0].mxu0
        %v862 = vadd.f32 %v478, %v861
        %v863 = vpop.f32.mrb[0].mxu0
        %v864 = vpop.f32.mrb[0].mxu0
        %v865 = vadd.f32 %v478, %v864
        %v866 = vpop.f32.mrb[0].mxu0
        %867 = vmatprep.mubr.bf16.mxu0 0
        %868 = vmatmul.mubr.bf16.gmra.mrb[0].mxu0 %v421
        %v869 = vpop.f32.mrb[0].mxu0
        %v870 = vadd.f32 %v478, %v869
        %v871 = vpop.f32.mrb[0].mxu0
        %v872 = vpop.f32.mrb[0].mxu0
        %v873 = vadd.f32 %v478, %v872
        %v874 = vpop.f32.mrb[0].mxu0
        %875 = vmatprep.mubr.bf16.mxu0 0
        %876 = vmatmul.mubr.bf16.gmra.mrb[0].mxu0 %v422
        %v877 = vpop.f32.mrb[0].mxu0
        %v878 = vadd.f32 %v478, %v877
        %v879 = vpop.f32.mrb[0].mxu0
        %v880 = vpop.f32.mrb[0].mxu0
        %v881 = vadd.f32 %v478, %v880
        %v882 = vpop.f32.mrb[0].mxu0
        %883 = vmatprep.mubr.bf16.mxu0 0
        %884 = vmatmul.mubr.bf16.gmra.mrb[0].mxu0 %v423
        %v885 = vpop.f32.mrb[0].mxu0
        %v886 = vadd.f32 %v478, %v885
        %v887 = vpop.f32.mrb[0].mxu0
        %v888 = vpop.f32.mrb[0].mxu0
        %v889 = vadd.f32 %v478, %v888
        %v890 = vpop.f32.mrb[0].mxu0
        %891 = vmatprep.mubr.bf16.mxu0 0
        %892 = vmatmul.mubr.bf16.gmra.mrb[0].mxu0 %v424
        %v893 = vpop.f32.mrb[0].mxu0
        %v894 = vadd.f32 %v478, %v893
        %v895 = vpop.f32.mrb[0].mxu0
        %v896 = vpop.f32.mrb[0].mxu0
        %v897 = vadd.f32 %v478, %v896
        %v898 = vpop.f32.mrb[0].mxu0
        %899 = vmatprep.mubr.bf16.mxu0 0
        %900 = vmatmul.mubr.bf16.gmra.mrb[0].mxu0 %v425
        %v901 = vpop.f32.mrb[0].mxu0
        %v902 = vadd.f32 %v478, %v901
        %v903 = vpop.f32.mrb[0].mxu0
        %v904 = vpop.f32.mrb[0].mxu0
        %v905 = vadd.f32 %v478, %v904
        %v906 = vpop.f32.mrb[0].mxu0
        %907 = vmatprep.mubr.bf16.mxu0 0
        %908 = vmatmul.mubr.bf16.gmra.mrb[0].mxu0 %v426
        %v909 = vpop.f32.mrb[0].mxu0
        %v910 = vadd.f32 %v478, %v909
        %v911 = vpop.f32.mrb[0].mxu0
        %v912 = vpop.f32.mrb[0].mxu0
        %v913 = vadd.f32 %v478, %v912
        %v914 = vpop.f32.mrb[0].mxu0
        %915 = vmatprep.mubr.bf16.mxu0 0
        %916 = vmatmul.mubr.bf16.gmra.mrb[0].mxu0 %v427
        %v917 = vpop.f32.mrb[0].mxu0
        %v918 = vadd.f32 %v478, %v917
        %v919 = vpop.f32.mrb[0].mxu0
        %v920 = vpop.f32.mrb[0].mxu0
        %v921 = vadd.f32 %v478, %v920
        %v922 = vpop.f32.mrb[0].mxu0
        %923 = vmatprep.mubr.bf16.mxu0 0
        %924 = vmatmul.mubr.bf16.gmra.mrb[0].mxu0 %v428
        %v925 = vpop.f32.mrb[0].mxu0
        %v926 = vadd.f32 %v478, %v925
        %v927 = vpop.f32.mrb[0].mxu0
        %v928 = vpop.f32.mrb[0].mxu0
        %v929 = vadd.f32 %v478, %v928
        %v930 = vpop.f32.mrb[0].mxu0
        %931 = vmatprep.mubr.bf16.mxu0 0
        %932 = vmatmul.mubr.bf16.gmra.mrb[0].mxu0 %v429
        %v933 = vpop.f32.mrb[0].mxu0
        %v934 = vadd.f32 %v478, %v933
        %v935 = vpop.f32.mrb[0].mxu0
        %v936 = vpop.f32.mrb[0].mxu0
        %v937 = vadd.f32 %v478, %v936
        %v938 = vpop.f32.mrb[0].mxu0
        %939 = vmatprep.mubr.bf16.mxu0 0
        %940 = vmatmul.mubr.bf16.gmra.mrb[0].mxu0 %v430
        %v941 = vpop.f32.mrb[0].mxu0
        %v942 = vadd.f32 %v478, %v941
        %v943 = vpop.f32.mrb[0].mxu0
        %v944 = vpop.f32.mrb[0].mxu0
        %v945 = vadd.f32 %v478, %v944
        %v946 = vpop.f32.mrb[0].mxu0
        %947 = vmatprep.mubr.bf16.mxu0 0
        %948 = vmatmul.mubr.bf16.gmra.mrb[0].mxu0 %v431
        %v949 = vpop.f32.mrb[0].mxu0
        %v950 = vadd.f32 %v478, %v949
        %v951 = vpop.f32.mrb[0].mxu0
        %v952 = vpop.f32.mrb[0].mxu0
        %v953 = vadd.f32 %v478, %v952
        %v954 = vpop.f32.mrb[0].mxu0
        %955 = vmatprep.mubr.bf16.mxu0 0
        %956 = vmatmul.mubr.bf16.gmra.mrb[0].mxu0 %v432
        %v957 = vpop.f32.mrb[0].mxu0
        %v958 = vadd.f32 %v478, %v957
        %v959 = vpop.f32.mrb[0].mxu0
        %v960 = vpop.f32.mrb[0].mxu0
        %v961 = vadd.f32 %v478, %v960
        %v962 = vpop.f32.mrb[0].mxu0
        %963 = vdwg.mxu0
        %v964 = vpack.c.bf16 %v649, %v645
        %v965 = vpack.c.bf16 %v651, %v647
        %v966 = vpack.c.bf16 %v841, %v838
        %v967 = vpack.c.bf16 %v659, %v655
        %v968 = vpack.c.bf16 %v661, %v657
        %v969 = vpack.c.bf16 %v849, %v846
        %v970 = vpack.c.bf16 %v669, %v665
        %v971 = vpack.c.bf16 %v671, %v667
        %v972 = vpack.c.bf16 %v857, %v854
        %v973 = vpack.c.bf16 %v679, %v675
        %v974 = vpack.c.bf16 %v681, %v677
        %v975 = vpack.c.bf16 %v865, %v862
        %v976 = vpack.c.bf16 %v689, %v685
        %v977 = vpack.c.bf16 %v691, %v687
        %v978 = vpack.c.bf16 %v873, %v870
        %v979 = vpack.c.bf16 %v699, %v695
        %v980 = vpack.c.bf16 %v701, %v697
        %v981 = vpack.c.bf16 %v881, %v878
        %v982 = vpack.c.bf16 %v709, %v705
        %v983 = vpack.c.bf16 %v711, %v707
        %v984 = vpack.c.bf16 %v889, %v886
        %v985 = vpack.c.bf16 %v719, %v715
        %v986 = vpack.c.bf16 %v721, %v717
        %v987 = vpack.c.bf16 %v897, %v894
        %v988 = vpack.c.bf16 %v729, %v725
        %v989 = vpack.c.bf16 %v731, %v727
        %v990 = vpack.c.bf16 %v905, %v902
        %v991 = vpack.c.bf16 %v739, %v735
        %v992 = vpack.c.bf16 %v741, %v737
        %v993 = vpack.c.bf16 %v913, %v910
        %v994 = vpack.c.bf16 %v749, %v745
        %v995 = vpack.c.bf16 %v751, %v747
        %v996 = vpack.c.bf16 %v921, %v918
        %v997 = vpack.c.bf16 %v759, %v755
        %v998 = vpack.c.bf16 %v761, %v757
        %v999 = vpack.c.bf16 %v929, %v926
        %v1000 = vpack.c.bf16 %v769, %v765
        %v1001 = vpack.c.bf16 %v771, %v767
        %v1002 = vpack.c.bf16 %v937, %v934
        %v1003 = vpack.c.bf16 %v779, %v775
        %v1004 = vpack.c.bf16 %v781, %v777
        %v1005 = vpack.c.bf16 %v945, %v942
        %v1006 = vpack.c.bf16 %v789, %v785
        %v1007 = vpack.c.bf16 %v791, %v787
        %v1008 = vpack.c.bf16 %v953, %v950
        %v1009 = vpack.c.bf16 %v799, %v795
        %v1010 = vpack.c.bf16 %v801, %v797
        %v1011 = vpack.c.bf16 %v961, %v958
        %v1060 = vunpack.c.l.b16 %v964
        %v1061 = vunpack.c.l.b16 %v965
        %v1062 = vunpack.c.l.b16 %v966
        %v1063 = vunpack.c.h.b16 %v964
        %v1064 = vunpack.c.h.b16 %v965
        %v1065 = vunpack.c.h.b16 %v966
        %v1066 = vunpack.c.l.b16 %v967
        %v1067 = vunpack.c.l.b16 %v968
        %v1068 = vunpack.c.l.b16 %v969
        %v1069 = vunpack.c.h.b16 %v967
        %v1070 = vunpack.c.h.b16 %v968
        %v1071 = vunpack.c.h.b16 %v969
        %v1072 = vunpack.c.l.b16 %v970
        %v1073 = vunpack.c.l.b16 %v971
        %v1074 = vunpack.c.l.b16 %v972
        %v1075 = vunpack.c.h.b16 %v970
        %v1076 = vunpack.c.h.b16 %v971
        %v1077 = vunpack.c.h.b16 %v972
        %v1078 = vunpack.c.l.b16 %v973
        %v1079 = vunpack.c.l.b16 %v974
        %v1080 = vunpack.c.l.b16 %v975
        %v1081 = vunpack.c.h.b16 %v973
        %v1082 = vunpack.c.h.b16 %v974
        %v1083 = vunpack.c.h.b16 %v975
        %v1084 = vunpack.c.l.b16 %v976
        %v1085 = vunpack.c.l.b16 %v977
        %v1086 = vunpack.c.l.b16 %v978
        %v1087 = vunpack.c.h.b16 %v976
        %v1088 = vunpack.c.h.b16 %v977
        %v1089 = vunpack.c.h.b16 %v978
        %v1090 = vunpack.c.l.b16 %v979
        %v1091 = vunpack.c.l.b16 %v980
        %v1092 = vunpack.c.l.b16 %v981
        %v1093 = vunpack.c.h.b16 %v979
        %v1094 = vunpack.c.h.b16 %v980
        %v1095 = vunpack.c.h.b16 %v981
        %v1096 = vunpack.c.l.b16 %v982
        %v1097 = vunpack.c.l.b16 %v983
        %v1098 = vunpack.c.l.b16 %v984
        %v1099 = vunpack.c.h.b16 %v982
        %v1100 = vunpack.c.h.b16 %v983
        %v1101 = vunpack.c.h.b16 %v984
        %v1102 = vunpack.c.l.b16 %v985
        %v1103 = vunpack.c.l.b16 %v986
        %v1104 = vunpack.c.l.b16 %v987
        %v1105 = vunpack.c.h.b16 %v985
        %v1106 = vunpack.c.h.b16 %v986
        %v1107 = vunpack.c.h.b16 %v987
        %v1108 = vunpack.c.l.b16 %v988
        %v1109 = vunpack.c.l.b16 %v989
        %v1110 = vunpack.c.l.b16 %v990
        %v1111 = vunpack.c.h.b16 %v988
        %v1112 = vunpack.c.h.b16 %v989
        %v1113 = vunpack.c.h.b16 %v990
        %v1114 = vunpack.c.l.b16 %v991
        %v1115 = vunpack.c.l.b16 %v992
        %v1116 = vunpack.c.l.b16 %v993
        %v1117 = vunpack.c.h.b16 %v991
        %v1118 = vunpack.c.h.b16 %v992
        %v1119 = vunpack.c.h.b16 %v993
        %v1120 = vunpack.c.l.b16 %v994
        %v1121 = vunpack.c.l.b16 %v995
        %v1122 = vunpack.c.l.b16 %v996
        %v1123 = vunpack.c.h.b16 %v994
        %v1124 = vunpack.c.h.b16 %v995
        %v1125 = vunpack.c.h.b16 %v996
        %v1126 = vunpack.c.l.b16 %v997
        %v1127 = vunpack.c.l.b16 %v998
        %v1128 = vunpack.c.l.b16 %v999
        %v1129 = vunpack.c.h.b16 %v997
        %v1130 = vunpack.c.h.b16 %v998
        %v1131 = vunpack.c.h.b16 %v999
        %v1132 = vunpack.c.l.b16 %v1000
        %v1133 = vunpack.c.l.b16 %v1001
        %v1134 = vunpack.c.l.b16 %v1002
        %v1135 = vunpack.c.h.b16 %v1000
        %v1136 = vunpack.c.h.b16 %v1001
        %v1137 = vunpack.c.h.b16 %v1002
        %v1138 = vunpack.c.l.b16 %v1003
        %v1139 = vunpack.c.l.b16 %v1004
        %v1140 = vunpack.c.l.b16 %v1005
        %v1141 = vunpack.c.h.b16 %v1003
        %v1142 = vunpack.c.h.b16 %v1004
        %v1143 = vunpack.c.h.b16 %v1005
        %v1144 = vunpack.c.l.b16 %v1006
        %v1145 = vunpack.c.l.b16 %v1007
        %v1146 = vunpack.c.l.b16 %v1008
        %v1147 = vunpack.c.h.b16 %v1006
        %v1148 = vunpack.c.h.b16 %v1007
        %v1149 = vunpack.c.h.b16 %v1008
        %v1150 = vunpack.c.l.b16 %v1009
        %v1151 = vunpack.c.l.b16 %v1010
        %v1152 = vunpack.c.l.b16 %v1011
        %v1153 = vunpack.c.h.b16 %v1009
        %v1154 = vunpack.c.h.b16 %v1010
        %v1155 = vunpack.c.h.b16 %v1011
        %v1156 = vpack.c.b16 %v1061, %v1060
        %v1157 = vpack.c.b16 %v1062, %v1062
        %v1158 = vpack.c.b16 %v1064, %v1063
        %v1159 = vpack.c.b16 %v1065, %v1065
        %v1160 = vpack.c.b16 %v1067, %v1066
        %v1161 = vpack.c.b16 %v1068, %v1068
        %v1162 = vpack.c.b16 %v1070, %v1069
        %v1163 = vpack.c.b16 %v1071, %v1071
        %v1164 = vpack.c.b16 %v1073, %v1072
        %v1165 = vpack.c.b16 %v1074, %v1074
        %v1166 = vpack.c.b16 %v1076, %v1075
        %v1167 = vpack.c.b16 %v1077, %v1077
        %v1168 = vpack.c.b16 %v1079, %v1078
        %v1169 = vpack.c.b16 %v1080, %v1080
        %v1170 = vpack.c.b16 %v1082, %v1081
        %v1171 = vpack.c.b16 %v1083, %v1083
        %v1172 = vpack.c.b16 %v1085, %v1084
        %v1173 = vpack.c.b16 %v1086, %v1086
        %v1174 = vpack.c.b16 %v1088, %v1087
        %v1175 = vpack.c.b16 %v1089, %v1089
        %v1176 = vpack.c.b16 %v1091, %v1090
        %v1177 = vpack.c.b16 %v1092, %v1092
        %v1178 = vpack.c.b16 %v1094, %v1093
        %v1179 = vpack.c.b16 %v1095, %v1095
        %v1180 = vpack.c.b16 %v1097, %v1096
        %v1181 = vpack.c.b16 %v1098, %v1098
        %v1182 = vpack.c.b16 %v1100, %v1099
        %v1183 = vpack.c.b16 %v1101, %v1101
        %v1184 = vpack.c.b16 %v1103, %v1102
        %v1185 = vpack.c.b16 %v1104, %v1104
        %v1186 = vpack.c.b16 %v1106, %v1105
        %v1187 = vpack.c.b16 %v1107, %v1107
        %v1188 = vpack.c.b16 %v1109, %v1108
        %v1189 = vpack.c.b16 %v1110, %v1110
        %v1190 = vpack.c.b16 %v1112, %v1111
        %v1191 = vpack.c.b16 %v1113, %v1113
        %v1192 = vpack.c.b16 %v1115, %v1114
        %v1193 = vpack.c.b16 %v1116, %v1116
        %v1194 = vpack.c.b16 %v1118, %v1117
        %v1195 = vpack.c.b16 %v1119, %v1119
        %v1196 = vpack.c.b16 %v1121, %v1120
        %v1197 = vpack.c.b16 %v1122, %v1122
        %v1198 = vpack.c.b16 %v1124, %v1123
        %v1199 = vpack.c.b16 %v1125, %v1125
        %v1200 = vpack.c.b16 %v1127, %v1126
        %v1201 = vpack.c.b16 %v1128, %v1128
        %v1202 = vpack.c.b16 %v1130, %v1129
        %v1203 = vpack.c.b16 %v1131, %v1131
        %v1204 = vpack.c.b16 %v1133, %v1132
        %v1205 = vpack.c.b16 %v1134, %v1134
        %v1206 = vpack.c.b16 %v1136, %v1135
        %v1207 = vpack.c.b16 %v1137, %v1137
        %v1208 = vpack.c.b16 %v1139, %v1138
        %v1209 = vpack.c.b16 %v1140, %v1140
        %v1210 = vpack.c.b16 %v1142, %v1141
        %v1211 = vpack.c.b16 %v1143, %v1143
        %v1212 = vpack.c.b16 %v1145, %v1144
        %v1213 = vpack.c.b16 %v1146, %v1146
        %v1214 = vpack.c.b16 %v1148, %v1147
        %v1215 = vpack.c.b16 %v1149, %v1149
        %v1216 = vpack.c.b16 %v1151, %v1150
        %v1217 = vpack.c.b16 %v1152, %v1152
        %v1218 = vpack.c.b16 %v1154, %v1153
        %v1219 = vpack.c.b16 %v1155, %v1155
        %1284 = vst [vmem:[%s297] sm:$0xff] %v1156
        %1285 = vst [vmem:[%s297 + $0x8] sm:$0xf] %v1157
        %1286 = vst [vmem:[%s297 + $0xc] sm:$0xff] %v1158
        %1287 = vst [vmem:[%s297 + $0x14] sm:$0xf] %v1159
        %1288 = vst [vmem:[%s297 + $0x18] sm:$0xff] %v1160
        %1289 = vst [vmem:[%s297 + $0x20] sm:$0xf] %v1161
        %1290 = vst [vmem:[%s297 + $0x24] sm:$0xff] %v1162
        %1291 = vst [vmem:[%s297 + $0x2c] sm:$0xf] %v1163
        %1292 = vst [vmem:[%s297 + $0x30] sm:$0xff] %v1164
        %1293 = vst [vmem:[%s297 + $0x38] sm:$0xf] %v1165
        %1294 = vst [vmem:[%s297 + $0x3c] sm:$0xff] %v1166
        %1295 = vst [vmem:[%s297 + $0x44] sm:$0xf] %v1167
        %1296 = vst [vmem:[%s297 + $0x48] sm:$0xff] %v1168
        %1297 = vst [vmem:[%s297 + $0x50] sm:$0xf] %v1169
        %1298 = vst [vmem:[%s297 + $0x54] sm:$0xff] %v1170
        %1299 = vst [vmem:[%s297 + $0x5c] sm:$0xf] %v1171
        %1300 = vst [vmem:[%s297 + $0x60] sm:$0xff] %v1172
        %1301 = vst [vmem:[%s297 + $0x68] sm:$0xf] %v1173
        %1302 = vst [vmem:[%s297 + $0x6c] sm:$0xff] %v1174
        %1303 = vst [vmem:[%s297 + $0x74] sm:$0xf] %v1175
        %1304 = vst [vmem:[%s297 + $0x78] sm:$0xff] %v1176
        %1305 = vst [vmem:[%s297 + $0x80] sm:$0xf] %v1177
        %1306 = vst [vmem:[%s297 + $0x84] sm:$0xff] %v1178
        %1307 = vst [vmem:[%s297 + $0x8c] sm:$0xf] %v1179
        %1308 = vst [vmem:[%s297 + $0x90] sm:$0xff] %v1180
        %1309 = vst [vmem:[%s297 + $0x98] sm:$0xf] %v1181
        %1310 = vst [vmem:[%s297 + $0x9c] sm:$0xff] %v1182
        %1311 = vst [vmem:[%s297 + $0xa4] sm:$0xf] %v1183
        %1312 = vst [vmem:[%s297 + $0xa8] sm:$0xff] %v1184
        %1313 = vst [vmem:[%s297 + $0xb0] sm:$0xf] %v1185
        %1314 = vst [vmem:[%s297 + $0xb4] sm:$0xff] %v1186
        %1315 = vst [vmem:[%s297 + $0xbc] sm:$0xf] %v1187
        %1316 = vst [vmem:[%s297 + $0xc0] sm:$0xff] %v1188
        %1317 = vst [vmem:[%s297 + $0xc8] sm:$0xf] %v1189
        %1318 = vst [vmem:[%s297 + $0xcc] sm:$0xff] %v1190
        %1319 = vst [vmem:[%s297 + $0xd4] sm:$0xf] %v1191
        %1320 = vst [vmem:[%s297 + $0xd8] sm:$0xff] %v1192
        %1321 = vst [vmem:[%s297 + $0xe0] sm:$0xf] %v1193
        %1322 = vst [vmem:[%s297 + $0xe4] sm:$0xff] %v1194
        %1323 = vst [vmem:[%s297 + $0xec] sm:$0xf] %v1195
        %1324 = vst [vmem:[%s297 + $0xf0] sm:$0xff] %v1196
        %1325 = vst [vmem:[%s297 + $0xf8] sm:$0xf] %v1197
        %1326 = vst [vmem:[%s297 + $0xfc] sm:$0xff] %v1198
        %1327 = vst [vmem:[%s297 + $0x104] sm:$0xf] %v1199
        %1328 = vst [vmem:[%s297 + $0x108] sm:$0xff] %v1200
        %1329 = vst [vmem:[%s297 + $0x110] sm:$0xf] %v1201
        %1330 = vst [vmem:[%s297 + $0x114] sm:$0xff] %v1202
        %1331 = vst [vmem:[%s297 + $0x11c] sm:$0xf] %v1203
        %1332 = vst [vmem:[%s297 + $0x120] sm:$0xff] %v1204
        %1333 = vst [vmem:[%s297 + $0x128] sm:$0xf] %v1205
        %1334 = vst [vmem:[%s297 + $0x12c] sm:$0xff] %v1206
        %1335 = vst [vmem:[%s297 + $0x134] sm:$0xf] %v1207
        %1336 = vst [vmem:[%s297 + $0x138] sm:$0xff] %v1208
        %1337 = vst [vmem:[%s297 + $0x140] sm:$0xf] %v1209
        %1338 = vst [vmem:[%s297 + $0x144] sm:$0xff] %v1210
        %1339 = vst [vmem:[%s297 + $0x14c] sm:$0xf] %v1211
        %1340 = vst [vmem:[%s297 + $0x150] sm:$0xff] %v1212
        %1341 = vst [vmem:[%s297 + $0x158] sm:$0xf] %v1213
        %1342 = vst [vmem:[%s297 + $0x15c] sm:$0xff] %v1214
        %1343 = vst [vmem:[%s297 + $0x164] sm:$0xf] %v1215
        %1344 = vst [vmem:[%s297 + $0x168] sm:$0xff] %v1216
        %1345 = vst [vmem:[%s297 + $0x170] sm:$0xf] %v1217
        %1346 = vst [vmem:[%s297 + $0x174] sm:$0xff] %v1218
        %1347 = vst [vmem:[%s297 + $0x17c] sm:$0xf] %v1219
        %s1348 = sand.u32 %s167, 1
        %s1349 = scalar_lea.sflag [#allocation4], %s1348
        %s1350 = sand.u32 %s167, 1
        %s1351 = smul.addr %s1350, 384
        %s1352 = scalar_lea.vmem [#allocation7], %s1351
        // Predicated region
        $region49: #{tpu_custom_call.1} parent=39 // pred_check
          %p1353 = pneg %p177
        $region50: #{tpu_custom_call.1} parent=39 // pred_check_branch
          %1355 = sbr.rel (%p1353) target = $region52
        $region51: #{tpu_custom_call.1} parent=39 // pred_region
          %s1356 = smul.u32 32, %s28
          %s1358 = ssub.s32 6144, 6144
          %1359 = vsyncadd %s1349, %s1358
          %s1360 = smul.addr %s1356, 3
          %s1361 = smul.addr %s27, 96
          %s1362 = sadd.s32 %s1360, %s1361
          %s1363 = smul.addr %s1362, 64
          %s1364 = scalar_lea.hbm %s5, %s1363
          %s1365 = sshll.u32 %s1352, 4
          %s1366 = int_to_ptr.vmem [resolvable:$true] %s1365
          %1371 = dma.vmem_to_hbm [thread:$0]  %s1366, 6144, %s1364, %s1349, 192, 192, 12
        $region52: #{tpu_custom_call.1} parent=39 // pred_fallthru
          _
      $region40: #{tpu_custom_call.1} parent=5 // pred_fallthru
        _
      %p1372 = scmp.le.s32.totalorder 2, %s18
      // Predicated region
      $region53: #{tpu_custom_call.1} parent=5 // pred_check
        %p1373 = pneg %p1372
      $region54: #{tpu_custom_call.1} parent=5 // pred_check_branch
        %1375 = sbr.rel (%p1373) target = $region56
      $region55: #{tpu_custom_call.1} parent=5 // pred_region
        %s1376 = ssub.s32 %s18, 2
        // Predicated region
        $region57: #{tpu_custom_call.1} parent=55 // pred_check
          %p1377 = pneg %p183
        $region58: #{tpu_custom_call.1} parent=55 // pred_check_branch
          %1379 = sbr.rel (%p1377) target = $region60
        $region59: #{tpu_custom_call.1} parent=55 // pred_region
          %s1380 = sand.u32 %s168, 1
          %s1381 = scalar_lea.sflag [#allocation4], %s1380
          %s1382 = sand.u32 %s168, 1
          %s1383 = smul.addr %s1382, 384
          %s1384 = scalar_lea.vmem [#allocation7], %s1383
          %1385 = dma.done %s1381, 6144
        $region60: #{tpu_custom_call.1} parent=55 // pred_fallthru
          _
      $region56: #{tpu_custom_call.1} parent=5 // pred_fallthru
        _
    $region6: #{tpu_custom_call.1} parent=1 // loop_footer
      %s22 = sadd.s32 1, %s18
    $region7: #{tpu_custom_call.1} parent=1 // loop_footer_branch
      %17 = sbr.rel target = $region3
    $region8: #{tpu_custom_call.1} parent=1 // loop_exit
      _
    %1386 = vsyncpa [#allocation3], 1
    %s1387 = scalar_lea.sflag [#allocation3], 1
    %1388 = vsyncpa %s1387, 1
    %1389 = vsyncpa [#allocation6], 1
    %1390 = vsyncpa [#allocation4], 1
    %s1391 = scalar_lea.sflag [#allocation4], 1
    %1392 = vsyncpa %s1391, 1

</llo_original>
